<compile_context>
chip_gen: v6e
topology: v6e:2x2x1
jax: 0.10.0
libtpu: 0.0.40
codegen_flags: <defaults>
</compile_context>

<pallas_src>
import jax
import jax.numpy as jnp
from jax import lax
from jax.experimental import pallas as pl
from jax.experimental.pallas import tpu as pltpu

# Conv hyper-parameters (from nn.Conv2d(3, 6, kernel_size=3, stride=1, padding=0))
C_IN = 3
C_OUT = 6
KH = KW = 3
STRIDE = 1
PAD = 0


def _conv2d_kernel(x_ref, w_ref, b_ref, o_ref):
    """One batch element per grid step; direct VPU convolution.

    x_ref: (1, C_IN, H, W)       f32, VMEM (W on lanes, H on sublanes)
    w_ref: (C_OUT*C_IN*KH*KW,)   f32, SMEM (flattened OIHW)
    b_ref: (C_OUT,)              f32, SMEM
    o_ref: (1, C_OUT, Ho, Wo)    f32, VMEM
    """
    ho = o_ref.shape[2]
    wo = o_ref.shape[3]

    # One register accumulator per output channel, initialized with the bias
    # (folds the bias add into the init instead of a separate epilogue pass).
    acc = [jnp.full((ho, wo), b_ref[co], dtype=jnp.float32)
           for co in range(C_OUT)]

    # 27 shifted slab reads from the ref, 162 vector*scalar FMAs on the VPU.
    for ci in range(C_IN):
        for kh in range(KH):
            for kw in range(KW):
                patch = x_ref[0, ci, kh:kh + ho, kw:kw + wo]      # (Ho, Wo)
                base = (ci * KH + kh) * KW + kw
                for co in range(C_OUT):
                    w_s = w_ref[co * (C_IN * KH * KW) + base]     # SMEM scalar
                    acc[co] = acc[co] + patch * w_s

    for co in range(C_OUT):
        o_ref[0, co, :, :] = acc[co]


@jax.jit
def conv2d_pallas(x_nchw, w_oihw, bias):
    """Conv2d forward matching torch.nn.Conv2d(3, 6, 3, stride=1, padding=0).

    x_nchw: (N, Cin, H, W) float32
    w_oihw: (Cout, Cin, KH, KW) float32
    bias:   (Cout,) float32
    returns (N, Cout, Ho, Wo) float32   (same NCHW layout as PyTorch)
    """
    n, cin, h, w = x_nchw.shape
    assert cin == C_IN
    ho = (h + 2 * PAD - KH) // STRIDE + 1
    wo = (w + 2 * PAD - KW) // STRIDE + 1

    w_flat = w_oihw.reshape(C_OUT * C_IN * KH * KW).astype(jnp.float32)
    b_vec = bias.astype(jnp.float32)

    flops = 2 * n * ho * wo * C_OUT * C_IN * KH * KW
    bytes_accessed = 4 * (n * C_IN * h * w
                          + C_OUT * C_IN * KH * KW
                          + C_OUT
                          + n * C_OUT * ho * wo)

    # TODO(synk): for large H*W, add an output-row-tile grid axis with a KH-1
    # row halo (and a VMEM scratch accumulator) so per-step VMEM stays within
    # v7x's 32 MiB scoped default; at these shapes one image per step is tiny.
    return pl.pallas_call(
        _conv2d_kernel,
        out_shape=jax.ShapeDtypeStruct((n, C_OUT, ho, wo), jnp.float32),
        grid=(n,),
        in_specs=[
            # Per-batch image block; last two dims equal the full array dims.
            pl.BlockSpec((1, C_IN, h, w), lambda i: (i, 0, 0, 0)),
            # Tiny parameter arrays live in SMEM as scalars.
            pl.BlockSpec(memory_space=pltpu.MemorySpace.SMEM),
            pl.BlockSpec(memory_space=pltpu.MemorySpace.SMEM),
        ],
        out_specs=pl.BlockSpec((1, C_OUT, ho, wo), lambda i: (i, 0, 0, 0)),
        compiler_params=pltpu.CompilerParams(
            dimension_semantics=("parallel",)),
        cost_estimate=pl.CostEstimate(
            flops=flops, transcendentals=0, bytes_accessed=bytes_accessed),
    )(x_nchw, w_flat, b_vec)


if __name__ == "__main__":
    key = jax.random.PRNGKey(0)
    kx, kw_key, kb_key = jax.random.split(key, 3)

    # Small deterministic example input, NCHW like PyTorch.
    N, H, W = 2, 16, 16
    x = jax.random.normal(kx, (N, C_IN, H, W), dtype=jnp.float32)

    # Deterministic parameter init (PyTorch-style uniform(-1/sqrt(fan_in), +)).
    fan_in = C_IN * KH * KW
    bound = 1.0 / (fan_in ** 0.5)
    weight = jax.random.uniform(
        kw_key, (C_OUT, C_IN, KH, KW), minval=-bound, maxval=bound,
        dtype=jnp.float32)
    bias = jax.random.uniform(
        kb_key, (C_OUT,), minval=-bound, maxval=bound, dtype=jnp.float32)

    y = conv2d_pallas(x, weight, bias)
    y = jax.block_until_ready(y)

    # Sanity check against the XLA reference conv.
    y_ref = lax.conv_general_dilated(
        x, weight, window_strides=(STRIDE, STRIDE), padding="VALID",
        dimension_numbers=("NCHW", "OIHW", "NCHW"),
    ) + bias.reshape(1, C_OUT, 1, 1)

    assert y.shape == (N, C_OUT, H - KH + 1, W - KW + 1)
    assert jnp.allclose(y, y_ref, atol=1e-5, rtol=1e-5)
    print("KERNEL_OK")
</pallas_src>

<mosaic_0001>
module attributes {stable_mosaic.version = 11 : i64} {
  func.func @_conv2d_kernel(%arg0: i32, %arg1: memref<1x3x16x16xf32, #tpu.memory_space<vmem>>, %arg2: memref<162xf32, #tpu.memory_space<smem>>, %arg3: memref<6xf32, #tpu.memory_space<smem>>, %arg4: memref<1x6x14x14xf32, #tpu.memory_space<vmem>>) attributes {dimension_semantics = [#tpu.dimension_semantics<parallel>], iteration_bounds = array<i64: 2>, scalar_prefetch = 0 : i64, scratch_operands = 0 : i64, tpu.core_type = #tpu.core_type<tc>, window_params = [{transform_indices = @transform_0, window_bounds = array<i64: 1, 3, 16, 16>}, {transform_indices = @transform_1, window_bounds = array<i64: 162>}, {transform_indices = @transform_2, window_bounds = array<i64: 6>}, {transform_indices = @transform_3, window_bounds = array<i64: 1, 6, 14, 14>}]} {
    %c0 = arith.constant 0 : index
    %0 = memref.load %arg3[%c0] : memref<6xf32, #tpu.memory_space<smem>>
    %1 = vector.broadcast %0 : f32 to vector<14x14xf32>
    %c1 = arith.constant 1 : index
    %2 = memref.load %arg3[%c1] : memref<6xf32, #tpu.memory_space<smem>>
    %3 = vector.broadcast %2 : f32 to vector<14x14xf32>
    %c2 = arith.constant 2 : index
    %4 = memref.load %arg3[%c2] : memref<6xf32, #tpu.memory_space<smem>>
    %5 = vector.broadcast %4 : f32 to vector<14x14xf32>
    %c3 = arith.constant 3 : index
    %6 = memref.load %arg3[%c3] : memref<6xf32, #tpu.memory_space<smem>>
    %7 = vector.broadcast %6 : f32 to vector<14x14xf32>
    %c4 = arith.constant 4 : index
    %8 = memref.load %arg3[%c4] : memref<6xf32, #tpu.memory_space<smem>>
    %9 = vector.broadcast %8 : f32 to vector<14x14xf32>
    %c5 = arith.constant 5 : index
    %10 = memref.load %arg3[%c5] : memref<6xf32, #tpu.memory_space<smem>>
    %11 = vector.broadcast %10 : f32 to vector<14x14xf32>
    %c0_0 = arith.constant 0 : index
    %c0_1 = arith.constant 0 : index
    %c0_2 = arith.constant 0 : index
    %c0_3 = arith.constant 0 : index
    %12 = vector.load %arg1[%c0_0, %c0_1, %c0_2, %c0_3] : memref<1x3x16x16xf32, #tpu.memory_space<vmem>>, vector<1x1x14x14xf32>
    %13 = vector.shape_cast %12 : vector<1x1x14x14xf32> to vector<14x14xf32>
    %c0_4 = arith.constant 0 : index
    %14 = memref.load %arg2[%c0_4] : memref<162xf32, #tpu.memory_space<smem>>
    %15 = vector.broadcast %14 : f32 to vector<14x14xf32>
    %16 = arith.mulf %13, %15 : vector<14x14xf32>
    %17 = arith.addf %1, %16 : vector<14x14xf32>
    %c27 = arith.constant 27 : index
    %18 = memref.load %arg2[%c27] : memref<162xf32, #tpu.memory_space<smem>>
    %19 = vector.broadcast %18 : f32 to vector<14x14xf32>
    %20 = arith.mulf %13, %19 : vector<14x14xf32>
    %21 = arith.addf %3, %20 : vector<14x14xf32>
    %c54 = arith.constant 54 : index
    %22 = memref.load %arg2[%c54] : memref<162xf32, #tpu.memory_space<smem>>
    %23 = vector.broadcast %22 : f32 to vector<14x14xf32>
    %24 = arith.mulf %13, %23 : vector<14x14xf32>
    %25 = arith.addf %5, %24 : vector<14x14xf32>
    %c81 = arith.constant 81 : index
    %26 = memref.load %arg2[%c81] : memref<162xf32, #tpu.memory_space<smem>>
    %27 = vector.broadcast %26 : f32 to vector<14x14xf32>
    %28 = arith.mulf %13, %27 : vector<14x14xf32>
    %29 = arith.addf %7, %28 : vector<14x14xf32>
    %c108 = arith.constant 108 : index
    %30 = memref.load %arg2[%c108] : memref<162xf32, #tpu.memory_space<smem>>
    %31 = vector.broadcast %30 : f32 to vector<14x14xf32>
    %32 = arith.mulf %13, %31 : vector<14x14xf32>
    %33 = arith.addf %9, %32 : vector<14x14xf32>
    %c135 = arith.constant 135 : index
    %34 = memref.load %arg2[%c135] : memref<162xf32, #tpu.memory_space<smem>>
    %35 = vector.broadcast %34 : f32 to vector<14x14xf32>
    %36 = arith.mulf %13, %35 : vector<14x14xf32>
    %37 = arith.addf %11, %36 : vector<14x14xf32>
    %c0_5 = arith.constant 0 : index
    %c0_6 = arith.constant 0 : index
    %c0_7 = arith.constant 0 : index
    %c1_8 = arith.constant 1 : index
    %38 = vector.load %arg1[%c0_5, %c0_6, %c0_7, %c1_8] : memref<1x3x16x16xf32, #tpu.memory_space<vmem>>, vector<1x1x14x14xf32>
    %39 = vector.shape_cast %38 : vector<1x1x14x14xf32> to vector<14x14xf32>
    %c1_9 = arith.constant 1 : index
    %40 = memref.load %arg2[%c1_9] : memref<162xf32, #tpu.memory_space<smem>>
    %41 = vector.broadcast %40 : f32 to vector<14x14xf32>
    %42 = arith.mulf %39, %41 : vector<14x14xf32>
    %43 = arith.addf %17, %42 : vector<14x14xf32>
    %c28 = arith.constant 28 : index
    %44 = memref.load %arg2[%c28] : memref<162xf32, #tpu.memory_space<smem>>
    %45 = vector.broadcast %44 : f32 to vector<14x14xf32>
    %46 = arith.mulf %39, %45 : vector<14x14xf32>
    %47 = arith.addf %21, %46 : vector<14x14xf32>
    %c55 = arith.constant 55 : index
    %48 = memref.load %arg2[%c55] : memref<162xf32, #tpu.memory_space<smem>>
    %49 = vector.broadcast %48 : f32 to vector<14x14xf32>
    %50 = arith.mulf %39, %49 : vector<14x14xf32>
    %51 = arith.addf %25, %50 : vector<14x14xf32>
    %c82 = arith.constant 82 : index
    %52 = memref.load %arg2[%c82] : memref<162xf32, #tpu.memory_space<smem>>
    %53 = vector.broadcast %52 : f32 to vector<14x14xf32>
    %54 = arith.mulf %39, %53 : vector<14x14xf32>
    %55 = arith.addf %29, %54 : vector<14x14xf32>
    %c109 = arith.constant 109 : index
    %56 = memref.load %arg2[%c109] : memref<162xf32, #tpu.memory_space<smem>>
    %57 = vector.broadcast %56 : f32 to vector<14x14xf32>
    %58 = arith.mulf %39, %57 : vector<14x14xf32>
    %59 = arith.addf %33, %58 : vector<14x14xf32>
    %c136 = arith.constant 136 : index
    %60 = memref.load %arg2[%c136] : memref<162xf32, #tpu.memory_space<smem>>
    %61 = vector.broadcast %60 : f32 to vector<14x14xf32>
    %62 = arith.mulf %39, %61 : vector<14x14xf32>
    %63 = arith.addf %37, %62 : vector<14x14xf32>
    %c0_10 = arith.constant 0 : index
    %c0_11 = arith.constant 0 : index
    %c0_12 = arith.constant 0 : index
    %c2_13 = arith.constant 2 : index
    %64 = vector.load %arg1[%c0_10, %c0_11, %c0_12, %c2_13] : memref<1x3x16x16xf32, #tpu.memory_space<vmem>>, vector<1x1x14x14xf32>
    %65 = vector.shape_cast %64 : vector<1x1x14x14xf32> to vector<14x14xf32>
    %c2_14 = arith.constant 2 : index
    %66 = memref.load %arg2[%c2_14] : memref<162xf32, #tpu.memory_space<smem>>
    %67 = vector.broadcast %66 : f32 to vector<14x14xf32>
    %68 = arith.mulf %65, %67 : vector<14x14xf32>
    %69 = arith.addf %43, %68 : vector<14x14xf32>
    %c29 = arith.constant 29 : index
    %70 = memref.load %arg2[%c29] : memref<162xf32, #tpu.memory_space<smem>>
    %71 = vector.broadcast %70 : f32 to vector<14x14xf32>
    %72 = arith.mulf %65, %71 : vector<14x14xf32>
    %73 = arith.addf %47, %72 : vector<14x14xf32>
    %c56 = arith.constant 56 : index
    %74 = memref.load %arg2[%c56] : memref<162xf32, #tpu.memory_space<smem>>
    %75 = vector.broadcast %74 : f32 to vector<14x14xf32>
    %76 = arith.mulf %65, %75 : vector<14x14xf32>
    %77 = arith.addf %51, %76 : vector<14x14xf32>
    %c83 = arith.constant 83 : index
    %78 = memref.load %arg2[%c83] : memref<162xf32, #tpu.memory_space<smem>>
    %79 = vector.broadcast %78 : f32 to vector<14x14xf32>
    %80 = arith.mulf %65, %79 : vector<14x14xf32>
    %81 = arith.addf %55, %80 : vector<14x14xf32>
    %c110 = arith.constant 110 : index
    %82 = memref.load %arg2[%c110] : memref<162xf32, #tpu.memory_space<smem>>
    %83 = vector.broadcast %82 : f32 to vector<14x14xf32>
    %84 = arith.mulf %65, %83 : vector<14x14xf32>
    %85 = arith.addf %59, %84 : vector<14x14xf32>
    %c137 = arith.constant 137 : index
    %86 = memref.load %arg2[%c137] : memref<162xf32, #tpu.memory_space<smem>>
    %87 = vector.broadcast %86 : f32 to vector<14x14xf32>
    %88 = arith.mulf %65, %87 : vector<14x14xf32>
    %89 = arith.addf %63, %88 : vector<14x14xf32>
    %c0_15 = arith.constant 0 : index
    %c0_16 = arith.constant 0 : index
    %c1_17 = arith.constant 1 : index
    %c0_18 = arith.constant 0 : index
    %90 = vector.load %arg1[%c0_15, %c0_16, %c1_17, %c0_18] : memref<1x3x16x16xf32, #tpu.memory_space<vmem>>, vector<1x1x14x14xf32>
    %91 = vector.shape_cast %90 : vector<1x1x14x14xf32> to vector<14x14xf32>
    %c3_19 = arith.constant 3 : index
    %92 = memref.load %arg2[%c3_19] : memref<162xf32, #tpu.memory_space<smem>>
    %93 = vector.broadcast %92 : f32 to vector<14x14xf32>
    %94 = arith.mulf %91, %93 : vector<14x14xf32>
    %95 = arith.addf %69, %94 : vector<14x14xf32>
    %c30 = arith.constant 30 : index
    %96 = memref.load %arg2[%c30] : memref<162xf32, #tpu.memory_space<smem>>
    %97 = vector.broadcast %96 : f32 to vector<14x14xf32>
    %98 = arith.mulf %91, %97 : vector<14x14xf32>
    %99 = arith.addf %73, %98 : vector<14x14xf32>
    %c57 = arith.constant 57 : index
    %100 = memref.load %arg2[%c57] : memref<162xf32, #tpu.memory_space<smem>>
    %101 = vector.broadcast %100 : f32 to vector<14x14xf32>
    %102 = arith.mulf %91, %101 : vector<14x14xf32>
    %103 = arith.addf %77, %102 : vector<14x14xf32>
    %c84 = arith.constant 84 : index
    %104 = memref.load %arg2[%c84] : memref<162xf32, #tpu.memory_space<smem>>
    %105 = vector.broadcast %104 : f32 to vector<14x14xf32>
    %106 = arith.mulf %91, %105 : vector<14x14xf32>
    %107 = arith.addf %81, %106 : vector<14x14xf32>
    %c111 = arith.constant 111 : index
    %108 = memref.load %arg2[%c111] : memref<162xf32, #tpu.memory_space<smem>>
    %109 = vector.broadcast %108 : f32 to vector<14x14xf32>
    %110 = arith.mulf %91, %109 : vector<14x14xf32>
    %111 = arith.addf %85, %110 : vector<14x14xf32>
    %c138 = arith.constant 138 : index
    %112 = memref.load %arg2[%c138] : memref<162xf32, #tpu.memory_space<smem>>
    %113 = vector.broadcast %112 : f32 to vector<14x14xf32>
    %114 = arith.mulf %91, %113 : vector<14x14xf32>
    %115 = arith.addf %89, %114 : vector<14x14xf32>
    %c0_20 = arith.constant 0 : index
    %c0_21 = arith.constant 0 : index
    %c1_22 = arith.constant 1 : index
    %c1_23 = arith.constant 1 : index
    %116 = vector.load %arg1[%c0_20, %c0_21, %c1_22, %c1_23] : memref<1x3x16x16xf32, #tpu.memory_space<vmem>>, vector<1x1x14x14xf32>
    %117 = vector.shape_cast %116 : vector<1x1x14x14xf32> to vector<14x14xf32>
    %c4_24 = arith.constant 4 : index
    %118 = memref.load %arg2[%c4_24] : memref<162xf32, #tpu.memory_space<smem>>
    %119 = vector.broadcast %118 : f32 to vector<14x14xf32>
    %120 = arith.mulf %117, %119 : vector<14x14xf32>
    %121 = arith.addf %95, %120 : vector<14x14xf32>
    %c31 = arith.constant 31 : index
    %122 = memref.load %arg2[%c31] : memref<162xf32, #tpu.memory_space<smem>>
    %123 = vector.broadcast %122 : f32 to vector<14x14xf32>
    %124 = arith.mulf %117, %123 : vector<14x14xf32>
    %125 = arith.addf %99, %124 : vector<14x14xf32>
    %c58 = arith.constant 58 : index
    %126 = memref.load %arg2[%c58] : memref<162xf32, #tpu.memory_space<smem>>
    %127 = vector.broadcast %126 : f32 to vector<14x14xf32>
    %128 = arith.mulf %117, %127 : vector<14x14xf32>
    %129 = arith.addf %103, %128 : vector<14x14xf32>
    %c85 = arith.constant 85 : index
    %130 = memref.load %arg2[%c85] : memref<162xf32, #tpu.memory_space<smem>>
    %131 = vector.broadcast %130 : f32 to vector<14x14xf32>
    %132 = arith.mulf %117, %131 : vector<14x14xf32>
    %133 = arith.addf %107, %132 : vector<14x14xf32>
    %c112 = arith.constant 112 : index
    %134 = memref.load %arg2[%c112] : memref<162xf32, #tpu.memory_space<smem>>
    %135 = vector.broadcast %134 : f32 to vector<14x14xf32>
    %136 = arith.mulf %117, %135 : vector<14x14xf32>
    %137 = arith.addf %111, %136 : vector<14x14xf32>
    %c139 = arith.constant 139 : index
    %138 = memref.load %arg2[%c139] : memref<162xf32, #tpu.memory_space<smem>>
    %139 = vector.broadcast %138 : f32 to vector<14x14xf32>
    %140 = arith.mulf %117, %139 : vector<14x14xf32>
    %141 = arith.addf %115, %140 : vector<14x14xf32>
    %c0_25 = arith.constant 0 : index
    %c0_26 = arith.constant 0 : index
    %c1_27 = arith.constant 1 : index
    %c2_28 = arith.constant 2 : index
    %142 = vector.load %arg1[%c0_25, %c0_26, %c1_27, %c2_28] : memref<1x3x16x16xf32, #tpu.memory_space<vmem>>, vector<1x1x14x14xf32>
    %143 = vector.shape_cast %142 : vector<1x1x14x14xf32> to vector<14x14xf32>
    %c5_29 = arith.constant 5 : index
    %144 = memref.load %arg2[%c5_29] : memref<162xf32, #tpu.memory_space<smem>>
    %145 = vector.broadcast %144 : f32 to vector<14x14xf32>
    %146 = arith.mulf %143, %145 : vector<14x14xf32>
    %147 = arith.addf %121, %146 : vector<14x14xf32>
    %c32 = arith.constant 32 : index
    %148 = memref.load %arg2[%c32] : memref<162xf32, #tpu.memory_space<smem>>
    %149 = vector.broadcast %148 : f32 to vector<14x14xf32>
    %150 = arith.mulf %143, %149 : vector<14x14xf32>
    %151 = arith.addf %125, %150 : vector<14x14xf32>
    %c59 = arith.constant 59 : index
    %152 = memref.load %arg2[%c59] : memref<162xf32, #tpu.memory_space<smem>>
    %153 = vector.broadcast %152 : f32 to vector<14x14xf32>
    %154 = arith.mulf %143, %153 : vector<14x14xf32>
    %155 = arith.addf %129, %154 : vector<14x14xf32>
    %c86 = arith.constant 86 : index
    %156 = memref.load %arg2[%c86] : memref<162xf32, #tpu.memory_space<smem>>
    %157 = vector.broadcast %156 : f32 to vector<14x14xf32>
    %158 = arith.mulf %143, %157 : vector<14x14xf32>
    %159 = arith.addf %133, %158 : vector<14x14xf32>
    %c113 = arith.constant 113 : index
    %160 = memref.load %arg2[%c113] : memref<162xf32, #tpu.memory_space<smem>>
    %161 = vector.broadcast %160 : f32 to vector<14x14xf32>
    %162 = arith.mulf %143, %161 : vector<14x14xf32>
    %163 = arith.addf %137, %162 : vector<14x14xf32>
    %c140 = arith.constant 140 : index
    %164 = memref.load %arg2[%c140] : memref<162xf32, #tpu.memory_space<smem>>
    %165 = vector.broadcast %164 : f32 to vector<14x14xf32>
    %166 = arith.mulf %143, %165 : vector<14x14xf32>
    %167 = arith.addf %141, %166 : vector<14x14xf32>
    %c0_30 = arith.constant 0 : index
    %c0_31 = arith.constant 0 : index
    %c2_32 = arith.constant 2 : index
    %c0_33 = arith.constant 0 : index
    %168 = vector.load %arg1[%c0_30, %c0_31, %c2_32, %c0_33] : memref<1x3x16x16xf32, #tpu.memory_space<vmem>>, vector<1x1x14x14xf32>
    %169 = vector.shape_cast %168 : vector<1x1x14x14xf32> to vector<14x14xf32>
    %c6 = arith.constant 6 : index
    %170 = memref.load %arg2[%c6] : memref<162xf32, #tpu.memory_space<smem>>
    %171 = vector.broadcast %170 : f32 to vector<14x14xf32>
    %172 = arith.mulf %169, %171 : vector<14x14xf32>
    %173 = arith.addf %147, %172 : vector<14x14xf32>
    %c33 = arith.constant 33 : index
    %174 = memref.load %arg2[%c33] : memref<162xf32, #tpu.memory_space<smem>>
    %175 = vector.broadcast %174 : f32 to vector<14x14xf32>
    %176 = arith.mulf %169, %175 : vector<14x14xf32>
    %177 = arith.addf %151, %176 : vector<14x14xf32>
    %c60 = arith.constant 60 : index
    %178 = memref.load %arg2[%c60] : memref<162xf32, #tpu.memory_space<smem>>
    %179 = vector.broadcast %178 : f32 to vector<14x14xf32>
    %180 = arith.mulf %169, %179 : vector<14x14xf32>
    %181 = arith.addf %155, %180 : vector<14x14xf32>
    %c87 = arith.constant 87 : index
    %182 = memref.load %arg2[%c87] : memref<162xf32, #tpu.memory_space<smem>>
    %183 = vector.broadcast %182 : f32 to vector<14x14xf32>
    %184 = arith.mulf %169, %183 : vector<14x14xf32>
    %185 = arith.addf %159, %184 : vector<14x14xf32>
    %c114 = arith.constant 114 : index
    %186 = memref.load %arg2[%c114] : memref<162xf32, #tpu.memory_space<smem>>
    %187 = vector.broadcast %186 : f32 to vector<14x14xf32>
    %188 = arith.mulf %169, %187 : vector<14x14xf32>
    %189 = arith.addf %163, %188 : vector<14x14xf32>
    %c141 = arith.constant 141 : index
    %190 = memref.load %arg2[%c141] : memref<162xf32, #tpu.memory_space<smem>>
    %191 = vector.broadcast %190 : f32 to vector<14x14xf32>
    %192 = arith.mulf %169, %191 : vector<14x14xf32>
    %193 = arith.addf %167, %192 : vector<14x14xf32>
    %c0_34 = arith.constant 0 : index
    %c0_35 = arith.constant 0 : index
    %c2_36 = arith.constant 2 : index
    %c1_37 = arith.constant 1 : index
    %194 = vector.load %arg1[%c0_34, %c0_35, %c2_36, %c1_37] : memref<1x3x16x16xf32, #tpu.memory_space<vmem>>, vector<1x1x14x14xf32>
    %195 = vector.shape_cast %194 : vector<1x1x14x14xf32> to vector<14x14xf32>
    %c7 = arith.constant 7 : index
    %196 = memref.load %arg2[%c7] : memref<162xf32, #tpu.memory_space<smem>>
    %197 = vector.broadcast %196 : f32 to vector<14x14xf32>
    %198 = arith.mulf %195, %197 : vector<14x14xf32>
    %199 = arith.addf %173, %198 : vector<14x14xf32>
    %c34 = arith.constant 34 : index
    %200 = memref.load %arg2[%c34] : memref<162xf32, #tpu.memory_space<smem>>
    %201 = vector.broadcast %200 : f32 to vector<14x14xf32>
    %202 = arith.mulf %195, %201 : vector<14x14xf32>
    %203 = arith.addf %177, %202 : vector<14x14xf32>
    %c61 = arith.constant 61 : index
    %204 = memref.load %arg2[%c61] : memref<162xf32, #tpu.memory_space<smem>>
    %205 = vector.broadcast %204 : f32 to vector<14x14xf32>
    %206 = arith.mulf %195, %205 : vector<14x14xf32>
    %207 = arith.addf %181, %206 : vector<14x14xf32>
    %c88 = arith.constant 88 : index
    %208 = memref.load %arg2[%c88] : memref<162xf32, #tpu.memory_space<smem>>
    %209 = vector.broadcast %208 : f32 to vector<14x14xf32>
    %210 = arith.mulf %195, %209 : vector<14x14xf32>
    %211 = arith.addf %185, %210 : vector<14x14xf32>
    %c115 = arith.constant 115 : index
    %212 = memref.load %arg2[%c115] : memref<162xf32, #tpu.memory_space<smem>>
    %213 = vector.broadcast %212 : f32 to vector<14x14xf32>
    %214 = arith.mulf %195, %213 : vector<14x14xf32>
    %215 = arith.addf %189, %214 : vector<14x14xf32>
    %c142 = arith.constant 142 : index
    %216 = memref.load %arg2[%c142] : memref<162xf32, #tpu.memory_space<smem>>
    %217 = vector.broadcast %216 : f32 to vector<14x14xf32>
    %218 = arith.mulf %195, %217 : vector<14x14xf32>
    %219 = arith.addf %193, %218 : vector<14x14xf32>
    %c0_38 = arith.constant 0 : index
    %c0_39 = arith.constant 0 : index
    %c2_40 = arith.constant 2 : index
    %c2_41 = arith.constant 2 : index
    %220 = vector.load %arg1[%c0_38, %c0_39, %c2_40, %c2_41] : memref<1x3x16x16xf32, #tpu.memory_space<vmem>>, vector<1x1x14x14xf32>
    %221 = vector.shape_cast %220 : vector<1x1x14x14xf32> to vector<14x14xf32>
    %c8 = arith.constant 8 : index
    %222 = memref.load %arg2[%c8] : memref<162xf32, #tpu.memory_space<smem>>
    %223 = vector.broadcast %222 : f32 to vector<14x14xf32>
    %224 = arith.mulf %221, %223 : vector<14x14xf32>
    %225 = arith.addf %199, %224 : vector<14x14xf32>
    %c35 = arith.constant 35 : index
    %226 = memref.load %arg2[%c35] : memref<162xf32, #tpu.memory_space<smem>>
    %227 = vector.broadcast %226 : f32 to vector<14x14xf32>
    %228 = arith.mulf %221, %227 : vector<14x14xf32>
    %229 = arith.addf %203, %228 : vector<14x14xf32>
    %c62 = arith.constant 62 : index
    %230 = memref.load %arg2[%c62] : memref<162xf32, #tpu.memory_space<smem>>
    %231 = vector.broadcast %230 : f32 to vector<14x14xf32>
    %232 = arith.mulf %221, %231 : vector<14x14xf32>
    %233 = arith.addf %207, %232 : vector<14x14xf32>
    %c89 = arith.constant 89 : index
    %234 = memref.load %arg2[%c89] : memref<162xf32, #tpu.memory_space<smem>>
    %235 = vector.broadcast %234 : f32 to vector<14x14xf32>
    %236 = arith.mulf %221, %235 : vector<14x14xf32>
    %237 = arith.addf %211, %236 : vector<14x14xf32>
    %c116 = arith.constant 116 : index
    %238 = memref.load %arg2[%c116] : memref<162xf32, #tpu.memory_space<smem>>
    %239 = vector.broadcast %238 : f32 to vector<14x14xf32>
    %240 = arith.mulf %221, %239 : vector<14x14xf32>
    %241 = arith.addf %215, %240 : vector<14x14xf32>
    %c143 = arith.constant 143 : index
    %242 = memref.load %arg2[%c143] : memref<162xf32, #tpu.memory_space<smem>>
    %243 = vector.broadcast %242 : f32 to vector<14x14xf32>
    %244 = arith.mulf %221, %243 : vector<14x14xf32>
    %245 = arith.addf %219, %244 : vector<14x14xf32>
    %c0_42 = arith.constant 0 : index
    %c1_43 = arith.constant 1 : index
    %c0_44 = arith.constant 0 : index
    %c0_45 = arith.constant 0 : index
    %246 = vector.load %arg1[%c0_42, %c1_43, %c0_44, %c0_45] : memref<1x3x16x16xf32, #tpu.memory_space<vmem>>, vector<1x1x14x14xf32>
    %247 = vector.shape_cast %246 : vector<1x1x14x14xf32> to vector<14x14xf32>
    %c9 = arith.constant 9 : index
    %248 = memref.load %arg2[%c9] : memref<162xf32, #tpu.memory_space<smem>>
    %249 = vector.broadcast %248 : f32 to vector<14x14xf32>
    %250 = arith.mulf %247, %249 : vector<14x14xf32>
    %251 = arith.addf %225, %250 : vector<14x14xf32>
    %c36 = arith.constant 36 : index
    %252 = memref.load %arg2[%c36] : memref<162xf32, #tpu.memory_space<smem>>
    %253 = vector.broadcast %252 : f32 to vector<14x14xf32>
    %254 = arith.mulf %247, %253 : vector<14x14xf32>
    %255 = arith.addf %229, %254 : vector<14x14xf32>
    %c63 = arith.constant 63 : index
    %256 = memref.load %arg2[%c63] : memref<162xf32, #tpu.memory_space<smem>>
    %257 = vector.broadcast %256 : f32 to vector<14x14xf32>
    %258 = arith.mulf %247, %257 : vector<14x14xf32>
    %259 = arith.addf %233, %258 : vector<14x14xf32>
    %c90 = arith.constant 90 : index
    %260 = memref.load %arg2[%c90] : memref<162xf32, #tpu.memory_space<smem>>
    %261 = vector.broadcast %260 : f32 to vector<14x14xf32>
    %262 = arith.mulf %247, %261 : vector<14x14xf32>
    %263 = arith.addf %237, %262 : vector<14x14xf32>
    %c117 = arith.constant 117 : index
    %264 = memref.load %arg2[%c117] : memref<162xf32, #tpu.memory_space<smem>>
    %265 = vector.broadcast %264 : f32 to vector<14x14xf32>
    %266 = arith.mulf %247, %265 : vector<14x14xf32>
    %267 = arith.addf %241, %266 : vector<14x14xf32>
    %c144 = arith.constant 144 : index
    %268 = memref.load %arg2[%c144] : memref<162xf32, #tpu.memory_space<smem>>
    %269 = vector.broadcast %268 : f32 to vector<14x14xf32>
    %270 = arith.mulf %247, %269 : vector<14x14xf32>
    %271 = arith.addf %245, %270 : vector<14x14xf32>
    %c0_46 = arith.constant 0 : index
    %c1_47 = arith.constant 1 : index
    %c0_48 = arith.constant 0 : index
    %c1_49 = arith.constant 1 : index
    %272 = vector.load %arg1[%c0_46, %c1_47, %c0_48, %c1_49] : memref<1x3x16x16xf32, #tpu.memory_space<vmem>>, vector<1x1x14x14xf32>
    %273 = vector.shape_cast %272 : vector<1x1x14x14xf32> to vector<14x14xf32>
    %c10 = arith.constant 10 : index
    %274 = memref.load %arg2[%c10] : memref<162xf32, #tpu.memory_space<smem>>
    %275 = vector.broadcast %274 : f32 to vector<14x14xf32>
    %276 = arith.mulf %273, %275 : vector<14x14xf32>
    %277 = arith.addf %251, %276 : vector<14x14xf32>
    %c37 = arith.constant 37 : index
    %278 = memref.load %arg2[%c37] : memref<162xf32, #tpu.memory_space<smem>>
    %279 = vector.broadcast %278 : f32 to vector<14x14xf32>
    %280 = arith.mulf %273, %279 : vector<14x14xf32>
    %281 = arith.addf %255, %280 : vector<14x14xf32>
    %c64 = arith.constant 64 : index
    %282 = memref.load %arg2[%c64] : memref<162xf32, #tpu.memory_space<smem>>
    %283 = vector.broadcast %282 : f32 to vector<14x14xf32>
    %284 = arith.mulf %273, %283 : vector<14x14xf32>
    %285 = arith.addf %259, %284 : vector<14x14xf32>
    %c91 = arith.constant 91 : index
    %286 = memref.load %arg2[%c91] : memref<162xf32, #tpu.memory_space<smem>>
    %287 = vector.broadcast %286 : f32 to vector<14x14xf32>
    %288 = arith.mulf %273, %287 : vector<14x14xf32>
    %289 = arith.addf %263, %288 : vector<14x14xf32>
    %c118 = arith.constant 118 : index
    %290 = memref.load %arg2[%c118] : memref<162xf32, #tpu.memory_space<smem>>
    %291 = vector.broadcast %290 : f32 to vector<14x14xf32>
    %292 = arith.mulf %273, %291 : vector<14x14xf32>
    %293 = arith.addf %267, %292 : vector<14x14xf32>
    %c145 = arith.constant 145 : index
    %294 = memref.load %arg2[%c145] : memref<162xf32, #tpu.memory_space<smem>>
    %295 = vector.broadcast %294 : f32 to vector<14x14xf32>
    %296 = arith.mulf %273, %295 : vector<14x14xf32>
    %297 = arith.addf %271, %296 : vector<14x14xf32>
    %c0_50 = arith.constant 0 : index
    %c1_51 = arith.constant 1 : index
    %c0_52 = arith.constant 0 : index
    %c2_53 = arith.constant 2 : index
    %298 = vector.load %arg1[%c0_50, %c1_51, %c0_52, %c2_53] : memref<1x3x16x16xf32, #tpu.memory_space<vmem>>, vector<1x1x14x14xf32>
    %299 = vector.shape_cast %298 : vector<1x1x14x14xf32> to vector<14x14xf32>
    %c11 = arith.constant 11 : index
    %300 = memref.load %arg2[%c11] : memref<162xf32, #tpu.memory_space<smem>>
    %301 = vector.broadcast %300 : f32 to vector<14x14xf32>
    %302 = arith.mulf %299, %301 : vector<14x14xf32>
    %303 = arith.addf %277, %302 : vector<14x14xf32>
    %c38 = arith.constant 38 : index
    %304 = memref.load %arg2[%c38] : memref<162xf32, #tpu.memory_space<smem>>
    %305 = vector.broadcast %304 : f32 to vector<14x14xf32>
    %306 = arith.mulf %299, %305 : vector<14x14xf32>
    %307 = arith.addf %281, %306 : vector<14x14xf32>
    %c65 = arith.constant 65 : index
    %308 = memref.load %arg2[%c65] : memref<162xf32, #tpu.memory_space<smem>>
    %309 = vector.broadcast %308 : f32 to vector<14x14xf32>
    %310 = arith.mulf %299, %309 : vector<14x14xf32>
    %311 = arith.addf %285, %310 : vector<14x14xf32>
    %c92 = arith.constant 92 : index
    %312 = memref.load %arg2[%c92] : memref<162xf32, #tpu.memory_space<smem>>
    %313 = vector.broadcast %312 : f32 to vector<14x14xf32>
    %314 = arith.mulf %299, %313 : vector<14x14xf32>
    %315 = arith.addf %289, %314 : vector<14x14xf32>
    %c119 = arith.constant 119 : index
    %316 = memref.load %arg2[%c119] : memref<162xf32, #tpu.memory_space<smem>>
    %317 = vector.broadcast %316 : f32 to vector<14x14xf32>
    %318 = arith.mulf %299, %317 : vector<14x14xf32>
    %319 = arith.addf %293, %318 : vector<14x14xf32>
    %c146 = arith.constant 146 : index
    %320 = memref.load %arg2[%c146] : memref<162xf32, #tpu.memory_space<smem>>
    %321 = vector.broadcast %320 : f32 to vector<14x14xf32>
    %322 = arith.mulf %299, %321 : vector<14x14xf32>
    %323 = arith.addf %297, %322 : vector<14x14xf32>
    %c0_54 = arith.constant 0 : index
    %c1_55 = arith.constant 1 : index
    %c1_56 = arith.constant 1 : index
    %c0_57 = arith.constant 0 : index
    %324 = vector.load %arg1[%c0_54, %c1_55, %c1_56, %c0_57] : memref<1x3x16x16xf32, #tpu.memory_space<vmem>>, vector<1x1x14x14xf32>
    %325 = vector.shape_cast %324 : vector<1x1x14x14xf32> to vector<14x14xf32>
    %c12 = arith.constant 12 : index
    %326 = memref.load %arg2[%c12] : memref<162xf32, #tpu.memory_space<smem>>
    %327 = vector.broadcast %326 : f32 to vector<14x14xf32>
    %328 = arith.mulf %325, %327 : vector<14x14xf32>
    %329 = arith.addf %303, %328 : vector<14x14xf32>
    %c39 = arith.constant 39 : index
    %330 = memref.load %arg2[%c39] : memref<162xf32, #tpu.memory_space<smem>>
    %331 = vector.broadcast %330 : f32 to vector<14x14xf32>
    %332 = arith.mulf %325, %331 : vector<14x14xf32>
    %333 = arith.addf %307, %332 : vector<14x14xf32>
    %c66 = arith.constant 66 : index
    %334 = memref.load %arg2[%c66] : memref<162xf32, #tpu.memory_space<smem>>
    %335 = vector.broadcast %334 : f32 to vector<14x14xf32>
    %336 = arith.mulf %325, %335 : vector<14x14xf32>
    %337 = arith.addf %311, %336 : vector<14x14xf32>
    %c93 = arith.constant 93 : index
    %338 = memref.load %arg2[%c93] : memref<162xf32, #tpu.memory_space<smem>>
    %339 = vector.broadcast %338 : f32 to vector<14x14xf32>
    %340 = arith.mulf %325, %339 : vector<14x14xf32>
    %341 = arith.addf %315, %340 : vector<14x14xf32>
    %c120 = arith.constant 120 : index
    %342 = memref.load %arg2[%c120] : memref<162xf32, #tpu.memory_space<smem>>
    %343 = vector.broadcast %342 : f32 to vector<14x14xf32>
    %344 = arith.mulf %325, %343 : vector<14x14xf32>
    %345 = arith.addf %319, %344 : vector<14x14xf32>
    %c147 = arith.constant 147 : index
    %346 = memref.load %arg2[%c147] : memref<162xf32, #tpu.memory_space<smem>>
    %347 = vector.broadcast %346 : f32 to vector<14x14xf32>
    %348 = arith.mulf %325, %347 : vector<14x14xf32>
    %349 = arith.addf %323, %348 : vector<14x14xf32>
    %c0_58 = arith.constant 0 : index
    %c1_59 = arith.constant 1 : index
    %c1_60 = arith.constant 1 : index
    %c1_61 = arith.constant 1 : index
    %350 = vector.load %arg1[%c0_58, %c1_59, %c1_60, %c1_61] : memref<1x3x16x16xf32, #tpu.memory_space<vmem>>, vector<1x1x14x14xf32>
    %351 = vector.shape_cast %350 : vector<1x1x14x14xf32> to vector<14x14xf32>
    %c13 = arith.constant 13 : index
    %352 = memref.load %arg2[%c13] : memref<162xf32, #tpu.memory_space<smem>>
    %353 = vector.broadcast %352 : f32 to vector<14x14xf32>
    %354 = arith.mulf %351, %353 : vector<14x14xf32>
    %355 = arith.addf %329, %354 : vector<14x14xf32>
    %c40 = arith.constant 40 : index
    %356 = memref.load %arg2[%c40] : memref<162xf32, #tpu.memory_space<smem>>
    %357 = vector.broadcast %356 : f32 to vector<14x14xf32>
    %358 = arith.mulf %351, %357 : vector<14x14xf32>
    %359 = arith.addf %333, %358 : vector<14x14xf32>
    %c67 = arith.constant 67 : index
    %360 = memref.load %arg2[%c67] : memref<162xf32, #tpu.memory_space<smem>>
    %361 = vector.broadcast %360 : f32 to vector<14x14xf32>
    %362 = arith.mulf %351, %361 : vector<14x14xf32>
    %363 = arith.addf %337, %362 : vector<14x14xf32>
    %c94 = arith.constant 94 : index
    %364 = memref.load %arg2[%c94] : memref<162xf32, #tpu.memory_space<smem>>
    %365 = vector.broadcast %364 : f32 to vector<14x14xf32>
    %366 = arith.mulf %351, %365 : vector<14x14xf32>
    %367 = arith.addf %341, %366 : vector<14x14xf32>
    %c121 = arith.constant 121 : index
    %368 = memref.load %arg2[%c121] : memref<162xf32, #tpu.memory_space<smem>>
    %369 = vector.broadcast %368 : f32 to vector<14x14xf32>
    %370 = arith.mulf %351, %369 : vector<14x14xf32>
    %371 = arith.addf %345, %370 : vector<14x14xf32>
    %c148 = arith.constant 148 : index
    %372 = memref.load %arg2[%c148] : memref<162xf32, #tpu.memory_space<smem>>
    %373 = vector.broadcast %372 : f32 to vector<14x14xf32>
    %374 = arith.mulf %351, %373 : vector<14x14xf32>
    %375 = arith.addf %349, %374 : vector<14x14xf32>
    %c0_62 = arith.constant 0 : index
    %c1_63 = arith.constant 1 : index
    %c1_64 = arith.constant 1 : index
    %c2_65 = arith.constant 2 : index
    %376 = vector.load %arg1[%c0_62, %c1_63, %c1_64, %c2_65] : memref<1x3x16x16xf32, #tpu.memory_space<vmem>>, vector<1x1x14x14xf32>
    %377 = vector.shape_cast %376 : vector<1x1x14x14xf32> to vector<14x14xf32>
    %c14 = arith.constant 14 : index
    %378 = memref.load %arg2[%c14] : memref<162xf32, #tpu.memory_space<smem>>
    %379 = vector.broadcast %378 : f32 to vector<14x14xf32>
    %380 = arith.mulf %377, %379 : vector<14x14xf32>
    %381 = arith.addf %355, %380 : vector<14x14xf32>
    %c41 = arith.constant 41 : index
    %382 = memref.load %arg2[%c41] : memref<162xf32, #tpu.memory_space<smem>>
    %383 = vector.broadcast %382 : f32 to vector<14x14xf32>
    %384 = arith.mulf %377, %383 : vector<14x14xf32>
    %385 = arith.addf %359, %384 : vector<14x14xf32>
    %c68 = arith.constant 68 : index
    %386 = memref.load %arg2[%c68] : memref<162xf32, #tpu.memory_space<smem>>
    %387 = vector.broadcast %386 : f32 to vector<14x14xf32>
    %388 = arith.mulf %377, %387 : vector<14x14xf32>
    %389 = arith.addf %363, %388 : vector<14x14xf32>
    %c95 = arith.constant 95 : index
    %390 = memref.load %arg2[%c95] : memref<162xf32, #tpu.memory_space<smem>>
    %391 = vector.broadcast %390 : f32 to vector<14x14xf32>
    %392 = arith.mulf %377, %391 : vector<14x14xf32>
    %393 = arith.addf %367, %392 : vector<14x14xf32>
    %c122 = arith.constant 122 : index
    %394 = memref.load %arg2[%c122] : memref<162xf32, #tpu.memory_space<smem>>
    %395 = vector.broadcast %394 : f32 to vector<14x14xf32>
    %396 = arith.mulf %377, %395 : vector<14x14xf32>
    %397 = arith.addf %371, %396 : vector<14x14xf32>
    %c149 = arith.constant 149 : index
    %398 = memref.load %arg2[%c149] : memref<162xf32, #tpu.memory_space<smem>>
    %399 = vector.broadcast %398 : f32 to vector<14x14xf32>
    %400 = arith.mulf %377, %399 : vector<14x14xf32>
    %401 = arith.addf %375, %400 : vector<14x14xf32>
    %c0_66 = arith.constant 0 : index
    %c1_67 = arith.constant 1 : index
    %c2_68 = arith.constant 2 : index
    %c0_69 = arith.constant 0 : index
    %402 = vector.load %arg1[%c0_66, %c1_67, %c2_68, %c0_69] : memref<1x3x16x16xf32, #tpu.memory_space<vmem>>, vector<1x1x14x14xf32>
    %403 = vector.shape_cast %402 : vector<1x1x14x14xf32> to vector<14x14xf32>
    %c15 = arith.constant 15 : index
    %404 = memref.load %arg2[%c15] : memref<162xf32, #tpu.memory_space<smem>>
    %405 = vector.broadcast %404 : f32 to vector<14x14xf32>
    %406 = arith.mulf %403, %405 : vector<14x14xf32>
    %407 = arith.addf %381, %406 : vector<14x14xf32>
    %c42 = arith.constant 42 : index
    %408 = memref.load %arg2[%c42] : memref<162xf32, #tpu.memory_space<smem>>
    %409 = vector.broadcast %408 : f32 to vector<14x14xf32>
    %410 = arith.mulf %403, %409 : vector<14x14xf32>
    %411 = arith.addf %385, %410 : vector<14x14xf32>
    %c69 = arith.constant 69 : index
    %412 = memref.load %arg2[%c69] : memref<162xf32, #tpu.memory_space<smem>>
    %413 = vector.broadcast %412 : f32 to vector<14x14xf32>
    %414 = arith.mulf %403, %413 : vector<14x14xf32>
    %415 = arith.addf %389, %414 : vector<14x14xf32>
    %c96 = arith.constant 96 : index
    %416 = memref.load %arg2[%c96] : memref<162xf32, #tpu.memory_space<smem>>
    %417 = vector.broadcast %416 : f32 to vector<14x14xf32>
    %418 = arith.mulf %403, %417 : vector<14x14xf32>
    %419 = arith.addf %393, %418 : vector<14x14xf32>
    %c123 = arith.constant 123 : index
    %420 = memref.load %arg2[%c123] : memref<162xf32, #tpu.memory_space<smem>>
    %421 = vector.broadcast %420 : f32 to vector<14x14xf32>
    %422 = arith.mulf %403, %421 : vector<14x14xf32>
    %423 = arith.addf %397, %422 : vector<14x14xf32>
    %c150 = arith.constant 150 : index
    %424 = memref.load %arg2[%c150] : memref<162xf32, #tpu.memory_space<smem>>
    %425 = vector.broadcast %424 : f32 to vector<14x14xf32>
    %426 = arith.mulf %403, %425 : vector<14x14xf32>
    %427 = arith.addf %401, %426 : vector<14x14xf32>
    %c0_70 = arith.constant 0 : index
    %c1_71 = arith.constant 1 : index
    %c2_72 = arith.constant 2 : index
    %c1_73 = arith.constant 1 : index
    %428 = vector.load %arg1[%c0_70, %c1_71, %c2_72, %c1_73] : memref<1x3x16x16xf32, #tpu.memory_space<vmem>>, vector<1x1x14x14xf32>
    %429 = vector.shape_cast %428 : vector<1x1x14x14xf32> to vector<14x14xf32>
    %c16 = arith.constant 16 : index
    %430 = memref.load %arg2[%c16] : memref<162xf32, #tpu.memory_space<smem>>
    %431 = vector.broadcast %430 : f32 to vector<14x14xf32>
    %432 = arith.mulf %429, %431 : vector<14x14xf32>
    %433 = arith.addf %407, %432 : vector<14x14xf32>
    %c43 = arith.constant 43 : index
    %434 = memref.load %arg2[%c43] : memref<162xf32, #tpu.memory_space<smem>>
    %435 = vector.broadcast %434 : f32 to vector<14x14xf32>
    %436 = arith.mulf %429, %435 : vector<14x14xf32>
    %437 = arith.addf %411, %436 : vector<14x14xf32>
    %c70 = arith.constant 70 : index
    %438 = memref.load %arg2[%c70] : memref<162xf32, #tpu.memory_space<smem>>
    %439 = vector.broadcast %438 : f32 to vector<14x14xf32>
    %440 = arith.mulf %429, %439 : vector<14x14xf32>
    %441 = arith.addf %415, %440 : vector<14x14xf32>
    %c97 = arith.constant 97 : index
    %442 = memref.load %arg2[%c97] : memref<162xf32, #tpu.memory_space<smem>>
    %443 = vector.broadcast %442 : f32 to vector<14x14xf32>
    %444 = arith.mulf %429, %443 : vector<14x14xf32>
    %445 = arith.addf %419, %444 : vector<14x14xf32>
    %c124 = arith.constant 124 : index
    %446 = memref.load %arg2[%c124] : memref<162xf32, #tpu.memory_space<smem>>
    %447 = vector.broadcast %446 : f32 to vector<14x14xf32>
    %448 = arith.mulf %429, %447 : vector<14x14xf32>
    %449 = arith.addf %423, %448 : vector<14x14xf32>
    %c151 = arith.constant 151 : index
    %450 = memref.load %arg2[%c151] : memref<162xf32, #tpu.memory_space<smem>>
    %451 = vector.broadcast %450 : f32 to vector<14x14xf32>
    %452 = arith.mulf %429, %451 : vector<14x14xf32>
    %453 = arith.addf %427, %452 : vector<14x14xf32>
    %c0_74 = arith.constant 0 : index
    %c1_75 = arith.constant 1 : index
    %c2_76 = arith.constant 2 : index
    %c2_77 = arith.constant 2 : index
    %454 = vector.load %arg1[%c0_74, %c1_75, %c2_76, %c2_77] : memref<1x3x16x16xf32, #tpu.memory_space<vmem>>, vector<1x1x14x14xf32>
    %455 = vector.shape_cast %454 : vector<1x1x14x14xf32> to vector<14x14xf32>
    %c17 = arith.constant 17 : index
    %456 = memref.load %arg2[%c17] : memref<162xf32, #tpu.memory_space<smem>>
    %457 = vector.broadcast %456 : f32 to vector<14x14xf32>
    %458 = arith.mulf %455, %457 : vector<14x14xf32>
    %459 = arith.addf %433, %458 : vector<14x14xf32>
    %c44 = arith.constant 44 : index
    %460 = memref.load %arg2[%c44] : memref<162xf32, #tpu.memory_space<smem>>
    %461 = vector.broadcast %460 : f32 to vector<14x14xf32>
    %462 = arith.mulf %455, %461 : vector<14x14xf32>
    %463 = arith.addf %437, %462 : vector<14x14xf32>
    %c71 = arith.constant 71 : index
    %464 = memref.load %arg2[%c71] : memref<162xf32, #tpu.memory_space<smem>>
    %465 = vector.broadcast %464 : f32 to vector<14x14xf32>
    %466 = arith.mulf %455, %465 : vector<14x14xf32>
    %467 = arith.addf %441, %466 : vector<14x14xf32>
    %c98 = arith.constant 98 : index
    %468 = memref.load %arg2[%c98] : memref<162xf32, #tpu.memory_space<smem>>
    %469 = vector.broadcast %468 : f32 to vector<14x14xf32>
    %470 = arith.mulf %455, %469 : vector<14x14xf32>
    %471 = arith.addf %445, %470 : vector<14x14xf32>
    %c125 = arith.constant 125 : index
    %472 = memref.load %arg2[%c125] : memref<162xf32, #tpu.memory_space<smem>>
    %473 = vector.broadcast %472 : f32 to vector<14x14xf32>
    %474 = arith.mulf %455, %473 : vector<14x14xf32>
    %475 = arith.addf %449, %474 : vector<14x14xf32>
    %c152 = arith.constant 152 : index
    %476 = memref.load %arg2[%c152] : memref<162xf32, #tpu.memory_space<smem>>
    %477 = vector.broadcast %476 : f32 to vector<14x14xf32>
    %478 = arith.mulf %455, %477 : vector<14x14xf32>
    %479 = arith.addf %453, %478 : vector<14x14xf32>
    %c0_78 = arith.constant 0 : index
    %c2_79 = arith.constant 2 : index
    %c0_80 = arith.constant 0 : index
    %c0_81 = arith.constant 0 : index
    %480 = vector.load %arg1[%c0_78, %c2_79, %c0_80, %c0_81] : memref<1x3x16x16xf32, #tpu.memory_space<vmem>>, vector<1x1x14x14xf32>
    %481 = vector.shape_cast %480 : vector<1x1x14x14xf32> to vector<14x14xf32>
    %c18 = arith.constant 18 : index
    %482 = memref.load %arg2[%c18] : memref<162xf32, #tpu.memory_space<smem>>
    %483 = vector.broadcast %482 : f32 to vector<14x14xf32>
    %484 = arith.mulf %481, %483 : vector<14x14xf32>
    %485 = arith.addf %459, %484 : vector<14x14xf32>
    %c45 = arith.constant 45 : index
    %486 = memref.load %arg2[%c45] : memref<162xf32, #tpu.memory_space<smem>>
    %487 = vector.broadcast %486 : f32 to vector<14x14xf32>
    %488 = arith.mulf %481, %487 : vector<14x14xf32>
    %489 = arith.addf %463, %488 : vector<14x14xf32>
    %c72 = arith.constant 72 : index
    %490 = memref.load %arg2[%c72] : memref<162xf32, #tpu.memory_space<smem>>
    %491 = vector.broadcast %490 : f32 to vector<14x14xf32>
    %492 = arith.mulf %481, %491 : vector<14x14xf32>
    %493 = arith.addf %467, %492 : vector<14x14xf32>
    %c99 = arith.constant 99 : index
    %494 = memref.load %arg2[%c99] : memref<162xf32, #tpu.memory_space<smem>>
    %495 = vector.broadcast %494 : f32 to vector<14x14xf32>
    %496 = arith.mulf %481, %495 : vector<14x14xf32>
    %497 = arith.addf %471, %496 : vector<14x14xf32>
    %c126 = arith.constant 126 : index
    %498 = memref.load %arg2[%c126] : memref<162xf32, #tpu.memory_space<smem>>
    %499 = vector.broadcast %498 : f32 to vector<14x14xf32>
    %500 = arith.mulf %481, %499 : vector<14x14xf32>
    %501 = arith.addf %475, %500 : vector<14x14xf32>
    %c153 = arith.constant 153 : index
    %502 = memref.load %arg2[%c153] : memref<162xf32, #tpu.memory_space<smem>>
    %503 = vector.broadcast %502 : f32 to vector<14x14xf32>
    %504 = arith.mulf %481, %503 : vector<14x14xf32>
    %505 = arith.addf %479, %504 : vector<14x14xf32>
    %c0_82 = arith.constant 0 : index
    %c2_83 = arith.constant 2 : index
    %c0_84 = arith.constant 0 : index
    %c1_85 = arith.constant 1 : index
    %506 = vector.load %arg1[%c0_82, %c2_83, %c0_84, %c1_85] : memref<1x3x16x16xf32, #tpu.memory_space<vmem>>, vector<1x1x14x14xf32>
    %507 = vector.shape_cast %506 : vector<1x1x14x14xf32> to vector<14x14xf32>
    %c19 = arith.constant 19 : index
    %508 = memref.load %arg2[%c19] : memref<162xf32, #tpu.memory_space<smem>>
    %509 = vector.broadcast %508 : f32 to vector<14x14xf32>
    %510 = arith.mulf %507, %509 : vector<14x14xf32>
    %511 = arith.addf %485, %510 : vector<14x14xf32>
    %c46 = arith.constant 46 : index
    %512 = memref.load %arg2[%c46] : memref<162xf32, #tpu.memory_space<smem>>
    %513 = vector.broadcast %512 : f32 to vector<14x14xf32>
    %514 = arith.mulf %507, %513 : vector<14x14xf32>
    %515 = arith.addf %489, %514 : vector<14x14xf32>
    %c73 = arith.constant 73 : index
    %516 = memref.load %arg2[%c73] : memref<162xf32, #tpu.memory_space<smem>>
    %517 = vector.broadcast %516 : f32 to vector<14x14xf32>
    %518 = arith.mulf %507, %517 : vector<14x14xf32>
    %519 = arith.addf %493, %518 : vector<14x14xf32>
    %c100 = arith.constant 100 : index
    %520 = memref.load %arg2[%c100] : memref<162xf32, #tpu.memory_space<smem>>
    %521 = vector.broadcast %520 : f32 to vector<14x14xf32>
    %522 = arith.mulf %507, %521 : vector<14x14xf32>
    %523 = arith.addf %497, %522 : vector<14x14xf32>
    %c127 = arith.constant 127 : index
    %524 = memref.load %arg2[%c127] : memref<162xf32, #tpu.memory_space<smem>>
    %525 = vector.broadcast %524 : f32 to vector<14x14xf32>
    %526 = arith.mulf %507, %525 : vector<14x14xf32>
    %527 = arith.addf %501, %526 : vector<14x14xf32>
    %c154 = arith.constant 154 : index
    %528 = memref.load %arg2[%c154] : memref<162xf32, #tpu.memory_space<smem>>
    %529 = vector.broadcast %528 : f32 to vector<14x14xf32>
    %530 = arith.mulf %507, %529 : vector<14x14xf32>
    %531 = arith.addf %505, %530 : vector<14x14xf32>
    %c0_86 = arith.constant 0 : index
    %c2_87 = arith.constant 2 : index
    %c0_88 = arith.constant 0 : index
    %c2_89 = arith.constant 2 : index
    %532 = vector.load %arg1[%c0_86, %c2_87, %c0_88, %c2_89] : memref<1x3x16x16xf32, #tpu.memory_space<vmem>>, vector<1x1x14x14xf32>
    %533 = vector.shape_cast %532 : vector<1x1x14x14xf32> to vector<14x14xf32>
    %c20 = arith.constant 20 : index
    %534 = memref.load %arg2[%c20] : memref<162xf32, #tpu.memory_space<smem>>
    %535 = vector.broadcast %534 : f32 to vector<14x14xf32>
    %536 = arith.mulf %533, %535 : vector<14x14xf32>
    %537 = arith.addf %511, %536 : vector<14x14xf32>
    %c47 = arith.constant 47 : index
    %538 = memref.load %arg2[%c47] : memref<162xf32, #tpu.memory_space<smem>>
    %539 = vector.broadcast %538 : f32 to vector<14x14xf32>
    %540 = arith.mulf %533, %539 : vector<14x14xf32>
    %541 = arith.addf %515, %540 : vector<14x14xf32>
    %c74 = arith.constant 74 : index
    %542 = memref.load %arg2[%c74] : memref<162xf32, #tpu.memory_space<smem>>
    %543 = vector.broadcast %542 : f32 to vector<14x14xf32>
    %544 = arith.mulf %533, %543 : vector<14x14xf32>
    %545 = arith.addf %519, %544 : vector<14x14xf32>
    %c101 = arith.constant 101 : index
    %546 = memref.load %arg2[%c101] : memref<162xf32, #tpu.memory_space<smem>>
    %547 = vector.broadcast %546 : f32 to vector<14x14xf32>
    %548 = arith.mulf %533, %547 : vector<14x14xf32>
    %549 = arith.addf %523, %548 : vector<14x14xf32>
    %c128 = arith.constant 128 : index
    %550 = memref.load %arg2[%c128] : memref<162xf32, #tpu.memory_space<smem>>
    %551 = vector.broadcast %550 : f32 to vector<14x14xf32>
    %552 = arith.mulf %533, %551 : vector<14x14xf32>
    %553 = arith.addf %527, %552 : vector<14x14xf32>
    %c155 = arith.constant 155 : index
    %554 = memref.load %arg2[%c155] : memref<162xf32, #tpu.memory_space<smem>>
    %555 = vector.broadcast %554 : f32 to vector<14x14xf32>
    %556 = arith.mulf %533, %555 : vector<14x14xf32>
    %557 = arith.addf %531, %556 : vector<14x14xf32>
    %c0_90 = arith.constant 0 : index
    %c2_91 = arith.constant 2 : index
    %c1_92 = arith.constant 1 : index
    %c0_93 = arith.constant 0 : index
    %558 = vector.load %arg1[%c0_90, %c2_91, %c1_92, %c0_93] : memref<1x3x16x16xf32, #tpu.memory_space<vmem>>, vector<1x1x14x14xf32>
    %559 = vector.shape_cast %558 : vector<1x1x14x14xf32> to vector<14x14xf32>
    %c21 = arith.constant 21 : index
    %560 = memref.load %arg2[%c21] : memref<162xf32, #tpu.memory_space<smem>>
    %561 = vector.broadcast %560 : f32 to vector<14x14xf32>
    %562 = arith.mulf %559, %561 : vector<14x14xf32>
    %563 = arith.addf %537, %562 : vector<14x14xf32>
    %c48 = arith.constant 48 : index
    %564 = memref.load %arg2[%c48] : memref<162xf32, #tpu.memory_space<smem>>
    %565 = vector.broadcast %564 : f32 to vector<14x14xf32>
    %566 = arith.mulf %559, %565 : vector<14x14xf32>
    %567 = arith.addf %541, %566 : vector<14x14xf32>
    %c75 = arith.constant 75 : index
    %568 = memref.load %arg2[%c75] : memref<162xf32, #tpu.memory_space<smem>>
    %569 = vector.broadcast %568 : f32 to vector<14x14xf32>
    %570 = arith.mulf %559, %569 : vector<14x14xf32>
    %571 = arith.addf %545, %570 : vector<14x14xf32>
    %c102 = arith.constant 102 : index
    %572 = memref.load %arg2[%c102] : memref<162xf32, #tpu.memory_space<smem>>
    %573 = vector.broadcast %572 : f32 to vector<14x14xf32>
    %574 = arith.mulf %559, %573 : vector<14x14xf32>
    %575 = arith.addf %549, %574 : vector<14x14xf32>
    %c129 = arith.constant 129 : index
    %576 = memref.load %arg2[%c129] : memref<162xf32, #tpu.memory_space<smem>>
    %577 = vector.broadcast %576 : f32 to vector<14x14xf32>
    %578 = arith.mulf %559, %577 : vector<14x14xf32>
    %579 = arith.addf %553, %578 : vector<14x14xf32>
    %c156 = arith.constant 156 : index
    %580 = memref.load %arg2[%c156] : memref<162xf32, #tpu.memory_space<smem>>
    %581 = vector.broadcast %580 : f32 to vector<14x14xf32>
    %582 = arith.mulf %559, %581 : vector<14x14xf32>
    %583 = arith.addf %557, %582 : vector<14x14xf32>
    %c0_94 = arith.constant 0 : index
    %c2_95 = arith.constant 2 : index
    %c1_96 = arith.constant 1 : index
    %c1_97 = arith.constant 1 : index
    %584 = vector.load %arg1[%c0_94, %c2_95, %c1_96, %c1_97] : memref<1x3x16x16xf32, #tpu.memory_space<vmem>>, vector<1x1x14x14xf32>
    %585 = vector.shape_cast %584 : vector<1x1x14x14xf32> to vector<14x14xf32>
    %c22 = arith.constant 22 : index
    %586 = memref.load %arg2[%c22] : memref<162xf32, #tpu.memory_space<smem>>
    %587 = vector.broadcast %586 : f32 to vector<14x14xf32>
    %588 = arith.mulf %585, %587 : vector<14x14xf32>
    %589 = arith.addf %563, %588 : vector<14x14xf32>
    %c49 = arith.constant 49 : index
    %590 = memref.load %arg2[%c49] : memref<162xf32, #tpu.memory_space<smem>>
    %591 = vector.broadcast %590 : f32 to vector<14x14xf32>
    %592 = arith.mulf %585, %591 : vector<14x14xf32>
    %593 = arith.addf %567, %592 : vector<14x14xf32>
    %c76 = arith.constant 76 : index
    %594 = memref.load %arg2[%c76] : memref<162xf32, #tpu.memory_space<smem>>
    %595 = vector.broadcast %594 : f32 to vector<14x14xf32>
    %596 = arith.mulf %585, %595 : vector<14x14xf32>
    %597 = arith.addf %571, %596 : vector<14x14xf32>
    %c103 = arith.constant 103 : index
    %598 = memref.load %arg2[%c103] : memref<162xf32, #tpu.memory_space<smem>>
    %599 = vector.broadcast %598 : f32 to vector<14x14xf32>
    %600 = arith.mulf %585, %599 : vector<14x14xf32>
    %601 = arith.addf %575, %600 : vector<14x14xf32>
    %c130 = arith.constant 130 : index
    %602 = memref.load %arg2[%c130] : memref<162xf32, #tpu.memory_space<smem>>
    %603 = vector.broadcast %602 : f32 to vector<14x14xf32>
    %604 = arith.mulf %585, %603 : vector<14x14xf32>
    %605 = arith.addf %579, %604 : vector<14x14xf32>
    %c157 = arith.constant 157 : index
    %606 = memref.load %arg2[%c157] : memref<162xf32, #tpu.memory_space<smem>>
    %607 = vector.broadcast %606 : f32 to vector<14x14xf32>
    %608 = arith.mulf %585, %607 : vector<14x14xf32>
    %609 = arith.addf %583, %608 : vector<14x14xf32>
    %c0_98 = arith.constant 0 : index
    %c2_99 = arith.constant 2 : index
    %c1_100 = arith.constant 1 : index
    %c2_101 = arith.constant 2 : index
    %610 = vector.load %arg1[%c0_98, %c2_99, %c1_100, %c2_101] : memref<1x3x16x16xf32, #tpu.memory_space<vmem>>, vector<1x1x14x14xf32>
    %611 = vector.shape_cast %610 : vector<1x1x14x14xf32> to vector<14x14xf32>
    %c23 = arith.constant 23 : index
    %612 = memref.load %arg2[%c23] : memref<162xf32, #tpu.memory_space<smem>>
    %613 = vector.broadcast %612 : f32 to vector<14x14xf32>
    %614 = arith.mulf %611, %613 : vector<14x14xf32>
    %615 = arith.addf %589, %614 : vector<14x14xf32>
    %c50 = arith.constant 50 : index
    %616 = memref.load %arg2[%c50] : memref<162xf32, #tpu.memory_space<smem>>
    %617 = vector.broadcast %616 : f32 to vector<14x14xf32>
    %618 = arith.mulf %611, %617 : vector<14x14xf32>
    %619 = arith.addf %593, %618 : vector<14x14xf32>
    %c77 = arith.constant 77 : index
    %620 = memref.load %arg2[%c77] : memref<162xf32, #tpu.memory_space<smem>>
    %621 = vector.broadcast %620 : f32 to vector<14x14xf32>
    %622 = arith.mulf %611, %621 : vector<14x14xf32>
    %623 = arith.addf %597, %622 : vector<14x14xf32>
    %c104 = arith.constant 104 : index
    %624 = memref.load %arg2[%c104] : memref<162xf32, #tpu.memory_space<smem>>
    %625 = vector.broadcast %624 : f32 to vector<14x14xf32>
    %626 = arith.mulf %611, %625 : vector<14x14xf32>
    %627 = arith.addf %601, %626 : vector<14x14xf32>
    %c131 = arith.constant 131 : index
    %628 = memref.load %arg2[%c131] : memref<162xf32, #tpu.memory_space<smem>>
    %629 = vector.broadcast %628 : f32 to vector<14x14xf32>
    %630 = arith.mulf %611, %629 : vector<14x14xf32>
    %631 = arith.addf %605, %630 : vector<14x14xf32>
    %c158 = arith.constant 158 : index
    %632 = memref.load %arg2[%c158] : memref<162xf32, #tpu.memory_space<smem>>
    %633 = vector.broadcast %632 : f32 to vector<14x14xf32>
    %634 = arith.mulf %611, %633 : vector<14x14xf32>
    %635 = arith.addf %609, %634 : vector<14x14xf32>
    %c0_102 = arith.constant 0 : index
    %c2_103 = arith.constant 2 : index
    %c2_104 = arith.constant 2 : index
    %c0_105 = arith.constant 0 : index
    %636 = vector.load %arg1[%c0_102, %c2_103, %c2_104, %c0_105] : memref<1x3x16x16xf32, #tpu.memory_space<vmem>>, vector<1x1x14x14xf32>
    %637 = vector.shape_cast %636 : vector<1x1x14x14xf32> to vector<14x14xf32>
    %c24 = arith.constant 24 : index
    %638 = memref.load %arg2[%c24] : memref<162xf32, #tpu.memory_space<smem>>
    %639 = vector.broadcast %638 : f32 to vector<14x14xf32>
    %640 = arith.mulf %637, %639 : vector<14x14xf32>
    %641 = arith.addf %615, %640 : vector<14x14xf32>
    %c51 = arith.constant 51 : index
    %642 = memref.load %arg2[%c51] : memref<162xf32, #tpu.memory_space<smem>>
    %643 = vector.broadcast %642 : f32 to vector<14x14xf32>
    %644 = arith.mulf %637, %643 : vector<14x14xf32>
    %645 = arith.addf %619, %644 : vector<14x14xf32>
    %c78 = arith.constant 78 : index
    %646 = memref.load %arg2[%c78] : memref<162xf32, #tpu.memory_space<smem>>
    %647 = vector.broadcast %646 : f32 to vector<14x14xf32>
    %648 = arith.mulf %637, %647 : vector<14x14xf32>
    %649 = arith.addf %623, %648 : vector<14x14xf32>
    %c105 = arith.constant 105 : index
    %650 = memref.load %arg2[%c105] : memref<162xf32, #tpu.memory_space<smem>>
    %651 = vector.broadcast %650 : f32 to vector<14x14xf32>
    %652 = arith.mulf %637, %651 : vector<14x14xf32>
    %653 = arith.addf %627, %652 : vector<14x14xf32>
    %c132 = arith.constant 132 : index
    %654 = memref.load %arg2[%c132] : memref<162xf32, #tpu.memory_space<smem>>
    %655 = vector.broadcast %654 : f32 to vector<14x14xf32>
    %656 = arith.mulf %637, %655 : vector<14x14xf32>
    %657 = arith.addf %631, %656 : vector<14x14xf32>
    %c159 = arith.constant 159 : index
    %658 = memref.load %arg2[%c159] : memref<162xf32, #tpu.memory_space<smem>>
    %659 = vector.broadcast %658 : f32 to vector<14x14xf32>
    %660 = arith.mulf %637, %659 : vector<14x14xf32>
    %661 = arith.addf %635, %660 : vector<14x14xf32>
    %c0_106 = arith.constant 0 : index
    %c2_107 = arith.constant 2 : index
    %c2_108 = arith.constant 2 : index
    %c1_109 = arith.constant 1 : index
    %662 = vector.load %arg1[%c0_106, %c2_107, %c2_108, %c1_109] : memref<1x3x16x16xf32, #tpu.memory_space<vmem>>, vector<1x1x14x14xf32>
    %663 = vector.shape_cast %662 : vector<1x1x14x14xf32> to vector<14x14xf32>
    %c25 = arith.constant 25 : index
    %664 = memref.load %arg2[%c25] : memref<162xf32, #tpu.memory_space<smem>>
    %665 = vector.broadcast %664 : f32 to vector<14x14xf32>
    %666 = arith.mulf %663, %665 : vector<14x14xf32>
    %667 = arith.addf %641, %666 : vector<14x14xf32>
    %c52 = arith.constant 52 : index
    %668 = memref.load %arg2[%c52] : memref<162xf32, #tpu.memory_space<smem>>
    %669 = vector.broadcast %668 : f32 to vector<14x14xf32>
    %670 = arith.mulf %663, %669 : vector<14x14xf32>
    %671 = arith.addf %645, %670 : vector<14x14xf32>
    %c79 = arith.constant 79 : index
    %672 = memref.load %arg2[%c79] : memref<162xf32, #tpu.memory_space<smem>>
    %673 = vector.broadcast %672 : f32 to vector<14x14xf32>
    %674 = arith.mulf %663, %673 : vector<14x14xf32>
    %675 = arith.addf %649, %674 : vector<14x14xf32>
    %c106 = arith.constant 106 : index
    %676 = memref.load %arg2[%c106] : memref<162xf32, #tpu.memory_space<smem>>
    %677 = vector.broadcast %676 : f32 to vector<14x14xf32>
    %678 = arith.mulf %663, %677 : vector<14x14xf32>
    %679 = arith.addf %653, %678 : vector<14x14xf32>
    %c133 = arith.constant 133 : index
    %680 = memref.load %arg2[%c133] : memref<162xf32, #tpu.memory_space<smem>>
    %681 = vector.broadcast %680 : f32 to vector<14x14xf32>
    %682 = arith.mulf %663, %681 : vector<14x14xf32>
    %683 = arith.addf %657, %682 : vector<14x14xf32>
    %c160 = arith.constant 160 : index
    %684 = memref.load %arg2[%c160] : memref<162xf32, #tpu.memory_space<smem>>
    %685 = vector.broadcast %684 : f32 to vector<14x14xf32>
    %686 = arith.mulf %663, %685 : vector<14x14xf32>
    %687 = arith.addf %661, %686 : vector<14x14xf32>
    %c0_110 = arith.constant 0 : index
    %c2_111 = arith.constant 2 : index
    %c2_112 = arith.constant 2 : index
    %c2_113 = arith.constant 2 : index
    %688 = vector.load %arg1[%c0_110, %c2_111, %c2_112, %c2_113] : memref<1x3x16x16xf32, #tpu.memory_space<vmem>>, vector<1x1x14x14xf32>
    %689 = vector.shape_cast %688 : vector<1x1x14x14xf32> to vector<14x14xf32>
    %c26 = arith.constant 26 : index
    %690 = memref.load %arg2[%c26] : memref<162xf32, #tpu.memory_space<smem>>
    %691 = vector.broadcast %690 : f32 to vector<14x14xf32>
    %692 = arith.mulf %689, %691 : vector<14x14xf32>
    %693 = arith.addf %667, %692 : vector<14x14xf32>
    %c53 = arith.constant 53 : index
    %694 = memref.load %arg2[%c53] : memref<162xf32, #tpu.memory_space<smem>>
    %695 = vector.broadcast %694 : f32 to vector<14x14xf32>
    %696 = arith.mulf %689, %695 : vector<14x14xf32>
    %697 = arith.addf %671, %696 : vector<14x14xf32>
    %c80 = arith.constant 80 : index
    %698 = memref.load %arg2[%c80] : memref<162xf32, #tpu.memory_space<smem>>
    %699 = vector.broadcast %698 : f32 to vector<14x14xf32>
    %700 = arith.mulf %689, %699 : vector<14x14xf32>
    %701 = arith.addf %675, %700 : vector<14x14xf32>
    %c107 = arith.constant 107 : index
    %702 = memref.load %arg2[%c107] : memref<162xf32, #tpu.memory_space<smem>>
    %703 = vector.broadcast %702 : f32 to vector<14x14xf32>
    %704 = arith.mulf %689, %703 : vector<14x14xf32>
    %705 = arith.addf %679, %704 : vector<14x14xf32>
    %c134 = arith.constant 134 : index
    %706 = memref.load %arg2[%c134] : memref<162xf32, #tpu.memory_space<smem>>
    %707 = vector.broadcast %706 : f32 to vector<14x14xf32>
    %708 = arith.mulf %689, %707 : vector<14x14xf32>
    %709 = arith.addf %683, %708 : vector<14x14xf32>
    %c161 = arith.constant 161 : index
    %710 = memref.load %arg2[%c161] : memref<162xf32, #tpu.memory_space<smem>>
    %711 = vector.broadcast %710 : f32 to vector<14x14xf32>
    %712 = arith.mulf %689, %711 : vector<14x14xf32>
    %713 = arith.addf %687, %712 : vector<14x14xf32>
    %c0_114 = arith.constant 0 : index
    %c0_115 = arith.constant 0 : index
    %c0_116 = arith.constant 0 : index
    %c0_117 = arith.constant 0 : index
    %714 = vector.load %arg4[%c0_114, %c0_115, %c0_116, %c0_117] : memref<1x6x14x14xf32, #tpu.memory_space<vmem>>, vector<1x1x14x14xf32>
    %715 = vector.shape_cast %714 : vector<1x1x14x14xf32> to vector<14x14xf32>
    %716 = vector.shape_cast %693 : vector<14x14xf32> to vector<1x1x14x14xf32>
    tpu.vector_store %arg4[%c0_114, %c0_115, %c0_116, %c0_117], %716 {strides = array<i32>} : memref<1x6x14x14xf32, #tpu.memory_space<vmem>>, vector<1x1x14x14xf32>,
    %c0_118 = arith.constant 0 : index
    %c1_119 = arith.constant 1 : index
    %c0_120 = arith.constant 0 : index
    %c0_121 = arith.constant 0 : index
    %717 = vector.load %arg4[%c0_118, %c1_119, %c0_120, %c0_121] : memref<1x6x14x14xf32, #tpu.memory_space<vmem>>, vector<1x1x14x14xf32>
    %718 = vector.shape_cast %717 : vector<1x1x14x14xf32> to vector<14x14xf32>
    %719 = vector.shape_cast %697 : vector<14x14xf32> to vector<1x1x14x14xf32>
    tpu.vector_store %arg4[%c0_118, %c1_119, %c0_120, %c0_121], %719 {strides = array<i32>} : memref<1x6x14x14xf32, #tpu.memory_space<vmem>>, vector<1x1x14x14xf32>,
    %c0_122 = arith.constant 0 : index
    %c2_123 = arith.constant 2 : index
    %c0_124 = arith.constant 0 : index
    %c0_125 = arith.constant 0 : index
    %720 = vector.load %arg4[%c0_122, %c2_123, %c0_124, %c0_125] : memref<1x6x14x14xf32, #tpu.memory_space<vmem>>, vector<1x1x14x14xf32>
    %721 = vector.shape_cast %720 : vector<1x1x14x14xf32> to vector<14x14xf32>
    %722 = vector.shape_cast %701 : vector<14x14xf32> to vector<1x1x14x14xf32>
    tpu.vector_store %arg4[%c0_122, %c2_123, %c0_124, %c0_125], %722 {strides = array<i32>} : memref<1x6x14x14xf32, #tpu.memory_space<vmem>>, vector<1x1x14x14xf32>,
    %c0_126 = arith.constant 0 : index
    %c3_127 = arith.constant 3 : index
    %c0_128 = arith.constant 0 : index
    %c0_129 = arith.constant 0 : index
    %723 = vector.load %arg4[%c0_126, %c3_127, %c0_128, %c0_129] : memref<1x6x14x14xf32, #tpu.memory_space<vmem>>, vector<1x1x14x14xf32>
    %724 = vector.shape_cast %723 : vector<1x1x14x14xf32> to vector<14x14xf32>
    %725 = vector.shape_cast %705 : vector<14x14xf32> to vector<1x1x14x14xf32>
    tpu.vector_store %arg4[%c0_126, %c3_127, %c0_128, %c0_129], %725 {strides = array<i32>} : memref<1x6x14x14xf32, #tpu.memory_space<vmem>>, vector<1x1x14x14xf32>,
    %c0_130 = arith.constant 0 : index
    %c4_131 = arith.constant 4 : index
    %c0_132 = arith.constant 0 : index
    %c0_133 = arith.constant 0 : index
    %726 = vector.load %arg4[%c0_130, %c4_131, %c0_132, %c0_133] : memref<1x6x14x14xf32, #tpu.memory_space<vmem>>, vector<1x1x14x14xf32>
    %727 = vector.shape_cast %726 : vector<1x1x14x14xf32> to vector<14x14xf32>
    %728 = vector.shape_cast %709 : vector<14x14xf32> to vector<1x1x14x14xf32>
    tpu.vector_store %arg4[%c0_130, %c4_131, %c0_132, %c0_133], %728 {strides = array<i32>} : memref<1x6x14x14xf32, #tpu.memory_space<vmem>>, vector<1x1x14x14xf32>,
    %c0_134 = arith.constant 0 : index
    %c5_135 = arith.constant 5 : index
    %c0_136 = arith.constant 0 : index
    %c0_137 = arith.constant 0 : index
    %729 = vector.load %arg4[%c0_134, %c5_135, %c0_136, %c0_137] : memref<1x6x14x14xf32, #tpu.memory_space<vmem>>, vector<1x1x14x14xf32>
    %730 = vector.shape_cast %729 : vector<1x1x14x14xf32> to vector<14x14xf32>
    %731 = vector.shape_cast %713 : vector<14x14xf32> to vector<1x1x14x14xf32>
    tpu.vector_store %arg4[%c0_134, %c5_135, %c0_136, %c0_137], %731 {strides = array<i32>} : memref<1x6x14x14xf32, #tpu.memory_space<vmem>>, vector<1x1x14x14xf32>,
    return
  }
  func.func @transform_0(%arg0: i32) -> (i32, i32, i32, i32) {
    %c0_i32 = arith.constant 0 : i32
    %c0_i32_0 = arith.constant 0 : i32
    %c0_i32_1 = arith.constant 0 : i32
    %c0_i32_2 = arith.constant 0 : i32
    return %arg0, %c0_i32, %c0_i32_0, %c0_i32_1 : i32, i32, i32, i32
  }
  func.func @transform_1(%arg0: i32) -> i32 {
    %c0_i32 = arith.constant 0 : i32
    %c0_i32_0 = arith.constant 0 : i32
    return %c0_i32 : i32
  }
  func.func @transform_2(%arg0: i32) -> i32 {
    %c0_i32 = arith.constant 0 : i32
    %c0_i32_0 = arith.constant 0 : i32
    return %c0_i32 : i32
  }
  func.func @transform_3(%arg0: i32) -> (i32, i32, i32, i32) {
    %c0_i32 = arith.constant 0 : i32
    %c0_i32_0 = arith.constant 0 : i32
    %c0_i32_1 = arith.constant 0 : i32
    %c0_i32_2 = arith.constant 0 : i32
    return %arg0, %c0_i32, %c0_i32_0, %c0_i32_1 : i32, i32, i32, i32
  }
}

</mosaic_0001>

<llo_original>
// kernel: conv2d_pallas.1
$region0: #{conv2d_pallas.1}
  #allocation0 [shape = 'u32[]', space=smem, size = 0x4, offset = 0x4, fixed_abs, tag = 'smem constant byte address 0x4 - core index']
  #allocation1 [shape = 'u32[144,128]{1,0:T(1,128)}', space=vmem, size = 0x12000, scoped, tag = 'internal scratch']
  %s0 = inlined_call_operand.vmem [shape: f32[2,3,16,16], index: 0, kind: input, shape index: {}]
  %s1 = inlined_call_operand.vmem [shape: f32[162], index: 1, kind: input, shape index: {}]
  %s2 = inlined_call_operand.vmem [shape: f32[6], index: 2, kind: input, shape index: {}]
  %s3 = inlined_call_operand.vmem [shape: f32[2,6,14,14], index: 3, kind: output, shape index: {}]
  %s4 = sld [smem:[#allocation0]]
  $region53: #{conv2d_pallas.1} parent=0
    _
  %s6 = ssub.s32 1, %s4
  %s7 = scalar_select 0, %s6, %s4
  $region1: #{conv2d_pallas.1} parent=0
    #allocation2 [shape = 'u8[1024]{0}', space=smem, size = 0x400, scoped, tag = 'input window, operand 1, single buffered']
    #allocation3 [shape = 's32[2]{0}', space=sflag, size = 0x8, scoped, tag = 'scoped memory for conv2d_pallas.1']
    #allocation4 [shape = 'u8[512]{0}', space=smem, size = 0x200, scoped, tag = 'input window, operand 2, single buffered']
    #allocation5 [shape = 's32[1]{0}', space=sflag, size = 0x4, scoped, tag = 'scoped memory for conv2d_pallas.1']
    %8 = vsyncpa [#allocation3], 0
    %9 = vsyncpa [#allocation5], 0
    loop: start=0, step=1, limit=4
    $region2: #{conv2d_pallas.1} parent=1 // loop_pre_header
      _
    $region3: #{conv2d_pallas.1} parent=1 // loop_header
      %s11 = sphi 0, %s15
      %p12 = scmp.ge.s32.totalorder %s11, 4
      %s21 = sphi 0, %s23
      %s24 = sphi 0, %s21
      %s25 = sphi 0, %s24
      %s41 = sphi 0, %s25
      %s45 = sphi 0, %s45
      %s47 = sphi 0, %s45
      %s48 = sphi 0, %s47
      %s62 = sphi 0, %s48
      %s66 = sphi 0, %s66
      %s68 = sphi 0, %s66
      %s69 = sphi 0, %s68
      %s83 = sphi 0, %s69
      %s89 = sphi 0, %s91
      %s92 = sphi 0, %s89
      %s93 = sphi 0, %s92
      %s109 = sphi 0, %s93
    $region4: #{conv2d_pallas.1} parent=1 // loop_header_branch
      %14 = sbr.rel (%p12) target = $region8
    $region5: #{conv2d_pallas.1} parent=1 // loop_body
      %s16 = ssub.s32 %s11, 1
      %s17 = ssub.s32 %s11, 2
      %s18 = sadd.s32 %s11, 1
      %s19 = ssub.s32 %s11, %s18
      %p20 = scmp.eq.s32.totalorder %s19, 0
      %s22 = sadd.s32 %s21, 1
      %s23 = scalar_select %p20, %s21, %s22
      %p26 = pneg %p20
      %p27 = scmp.eq.s32.totalorder %s11, 1
      %p28 = por %p26, %p27
      %p29 = scmp.ne.s32.totalorder %s21, %s24
      %p30 = scmp.eq.s32.totalorder %s11, 0
      %p31 = por %p29, %p30
      %p32 = scmp.ne.s32.totalorder %s21, %s24
      %p33 = scmp.eq.s32.totalorder %s16, 1
      %p34 = por %p32, %p33
      %p35 = scmp.ne.s32.totalorder %s24, %s25
      %p36 = scmp.eq.s32.totalorder %s16, 0
      %p37 = por %p35, %p36
      %p38 = scmp.ne.s32.totalorder %s24, %s25
      %p39 = scmp.eq.s32.totalorder %s17, 1
      %p40 = por %p38, %p39
      %p42 = scmp.ne.s32.totalorder %s25, %s41
      %p43 = scmp.eq.s32.totalorder %s17, 0
      %p44 = por %p42, %p43
      %s46 = sadd.s32 %s45, 1
      %p49 = scmp.eq.s32.totalorder %s11, 1
      %p50 = scmp.ne.s32.totalorder %s45, %s47
      %p51 = scmp.eq.s32.totalorder %s11, 0
      %p52 = por %p50, %p51
      %p53 = scmp.ne.s32.totalorder %s45, %s47
      %p54 = scmp.eq.s32.totalorder %s16, 1
      %p55 = por %p53, %p54
      %p56 = scmp.ne.s32.totalorder %s47, %s48
      %p57 = scmp.eq.s32.totalorder %s16, 0
      %p58 = por %p56, %p57
      %p59 = scmp.ne.s32.totalorder %s47, %s48
      %p60 = scmp.eq.s32.totalorder %s17, 1
      %p61 = por %p59, %p60
      %p63 = scmp.ne.s32.totalorder %s48, %s62
      %p64 = scmp.eq.s32.totalorder %s17, 0
      %p65 = por %p63, %p64
      %s67 = sadd.s32 %s66, 1
      %p70 = scmp.eq.s32.totalorder %s11, 1
      %p71 = scmp.ne.s32.totalorder %s66, %s68
      %p72 = scmp.eq.s32.totalorder %s11, 0
      %p73 = por %p71, %p72
      %p74 = scmp.ne.s32.totalorder %s66, %s68
      %p75 = scmp.eq.s32.totalorder %s16, 1
      %p76 = por %p74, %p75
      %p77 = scmp.ne.s32.totalorder %s68, %s69
      %p78 = scmp.eq.s32.totalorder %s16, 0
      %p79 = por %p77, %p78
      %p80 = scmp.ne.s32.totalorder %s68, %s69
      %p81 = scmp.eq.s32.totalorder %s17, 1
      %p82 = por %p80, %p81
      %p84 = scmp.ne.s32.totalorder %s69, %s83
      %p85 = scmp.eq.s32.totalorder %s17, 0
      %p86 = por %p84, %p85
      %s87 = ssub.s32 %s11, %s18
      %p88 = scmp.eq.s32.totalorder %s87, 0
      %s90 = sadd.s32 %s89, 1
      %s91 = scalar_select %p88, %s89, %s90
      %p94 = pneg %p88
      %p95 = scmp.eq.s32.totalorder %s11, 1
      %p96 = por %p94, %p95
      %p97 = scmp.ne.s32.totalorder %s89, %s92
      %p98 = scmp.eq.s32.totalorder %s11, 0
      %p99 = por %p97, %p98
      %p100 = scmp.ne.s32.totalorder %s89, %s92
      %p101 = scmp.eq.s32.totalorder %s16, 1
      %p102 = por %p100, %p101
      %p103 = scmp.ne.s32.totalorder %s92, %s93
      %p104 = scmp.eq.s32.totalorder %s16, 0
      %p105 = por %p103, %p104
      %p106 = scmp.ne.s32.totalorder %s92, %s93
      %p107 = scmp.eq.s32.totalorder %s17, 1
      %p108 = por %p106, %p107
      %p110 = scmp.ne.s32.totalorder %s93, %s109
      %p111 = scmp.eq.s32.totalorder %s17, 0
      %p112 = por %p110, %p111
      %p113 = scmp.le.s32.totalorder 1, %s11
      %p114 = scmp.lt.s32.totalorder %s11, 3
      %p115 = pnand %p113, %p114
      %p116 = pneg %p115
      // Predicated region
      $region9: #{conv2d_pallas.1} parent=5 // pred_check
        _
      $region10: #{conv2d_pallas.1} parent=5 // pred_check_branch
        %118 = sbr.rel (%p115) target = $region12
      $region11: #{conv2d_pallas.1} parent=5 // pred_region
        %s119 = ssub.s32 %s11, 1
        // Predicated region
        $region13: #{conv2d_pallas.1} parent=11 // pred_check
          %p120 = pneg %p58
        $region14: #{conv2d_pallas.1} parent=11 // pred_check_branch
          %122 = sbr.rel (%p120) target = $region16
        $region15: #{conv2d_pallas.1} parent=11 // pred_region
          %s124 = ssub.s32 32, 32
          %125 = vsyncadd [#allocation3], %s124
          %s127 = sshll.u32 %s1, 4
          %s128 = int_to_ptr.vmem [resolvable:$true] %s127
          %130 = dma.vmem_to_smem %s128, 32, [#allocation2], [#allocation3]
        $region16: #{conv2d_pallas.1} parent=11 // pred_fallthru
          _
        // Predicated region
        $region17: #{conv2d_pallas.1} parent=11 // pred_check
          %p131 = pneg %p79
        $region18: #{conv2d_pallas.1} parent=11 // pred_check_branch
          %133 = sbr.rel (%p131) target = $region20
        $region19: #{conv2d_pallas.1} parent=11 // pred_region
          %s135 = ssub.s32 16, 16
          %136 = vsyncadd [#allocation5], %s135
          %s138 = sshll.u32 %s2, 4
          %s139 = int_to_ptr.vmem [resolvable:$true] %s138
          %141 = dma.vmem_to_smem %s139, 16, [#allocation4], [#allocation5]
        $region20: #{conv2d_pallas.1} parent=11 // pred_fallthru
          _
      $region12: #{conv2d_pallas.1} parent=5 // pred_fallthru
        _
      %p142 = scmp.lt.s32.totalorder %s11, 2
      // Predicated region
      $region21: #{conv2d_pallas.1} parent=5 // pred_check
        %p143 = pneg %p142
      $region22: #{conv2d_pallas.1} parent=5 // pred_check_branch
        %145 = sbr.rel (%p143) target = $region24
      $region23: #{conv2d_pallas.1} parent=5 // pred_region
        // Predicated region
        $region25: #{conv2d_pallas.1} parent=23 // pred_check
          %p146 = pneg %p31
        $region26: #{conv2d_pallas.1} parent=23 // pred_check_branch
          %148 = sbr.rel (%p146) target = $region28
        $region27: #{conv2d_pallas.1} parent=23 // pred_region
          %p149 = scmp.lt.s32.totalorder %s11, 1
          %s150 = scalar_select %p149, %s11, 1
          %s151 = smul.addr %s150, 6
          %s152 = smul.addr %s151, 8
          %s153 = scalar_lea.vmem %s0, %s152
        $region28: #{conv2d_pallas.1} parent=23 // pred_fallthru
          _
      $region24: #{conv2d_pallas.1} parent=5 // pred_fallthru
        _
      %p154 = scmp.le.s32.totalorder 1, %s11
      %p155 = scmp.lt.s32.totalorder %s11, 3
      %p156 = pnand %p154, %p155
      %p157 = pneg %p156
      // Predicated region
      $region29: #{conv2d_pallas.1} parent=5 // pred_check
        _
      $region30: #{conv2d_pallas.1} parent=5 // pred_check_branch
        %159 = sbr.rel (%p156) target = $region32
      $region31: #{conv2d_pallas.1} parent=5 // pred_region
        %s160 = ssub.s32 %s11, 1
        // Predicated region
        $region33: #{conv2d_pallas.1} parent=31 // pred_check
          %p161 = pneg %p58
        $region34: #{conv2d_pallas.1} parent=31 // pred_check_branch
          %163 = sbr.rel (%p161) target = $region36
        $region35: #{conv2d_pallas.1} parent=31 // pred_region
          %164 = dma.done [#allocation3], 32
        $region36: #{conv2d_pallas.1} parent=31 // pred_fallthru
          _
        // Predicated region
        $region37: #{conv2d_pallas.1} parent=31 // pred_check
          %p165 = pneg %p79
        $region38: #{conv2d_pallas.1} parent=31 // pred_check_branch
          %167 = sbr.rel (%p165) target = $region40
        $region39: #{conv2d_pallas.1} parent=31 // pred_region
          %168 = dma.done [#allocation5], 16
        $region40: #{conv2d_pallas.1} parent=31 // pred_fallthru
          _
        %169 = sfence
        %p170 = scmp.lt.s32.totalorder %s16, 1
        %s171 = scalar_select %p170, %s16, 1
        %s172 = smul.addr %s171, 6
        %s173 = smul.addr %s172, 8
        %s174 = scalar_lea.vmem %s0, %s173
        %p175 = pneg %p37
        %p176 = pneg %p34
        %p177 = pneg %p58
        %p178 = pneg %p55
        %p179 = pneg %p79
        %p180 = pneg %p76
        %p181 = pneg %p105
        %p182 = pneg %p102
        %p183 = scmp.lt.s32.totalorder %s16, 1
        %s184 = scalar_select %p183, %s16, 1
        %s185 = smul.addr %s184, 12
        %s186 = smul.addr %s185, 8
        %s187 = scalar_lea.vmem %s3, %s186
        %p188 = scmp.lt.s32.totalorder %s16, 1
        %s189 = scalar_select %p188, %s16, 1
        %s190 = smul.addr %s189, 6
        %s191 = smul.addr %s190, 8
        %s192 = scalar_lea.vmem %s0, %s191
        %p193 = scmp.lt.s32.totalorder %s16, 1
        %s194 = scalar_select %p193, %s16, 1
        %s195 = smul.addr %s194, 12
        %s196 = smul.addr %s195, 8
        %s197 = scalar_lea.vmem %s3, %s196
        %s198 = sld [smem:[#allocation4]]
        %v199 = vstv %s198
        %s200 = sld [smem:[#allocation4 + $0x1]]
        %v201 = vstv %s200
        %s202 = sld [smem:[#allocation4 + $0x2]]
        %v203 = vstv %s202
        %s204 = sld [smem:[#allocation4 + $0x3]]
        %v205 = vstv %s204
        %s206 = sld [smem:[#allocation4 + $0x4]]
        %v207 = vstv %s206
        %s208 = sld [smem:[#allocation4 + $0x5]]
        %v209 = vstv %s208
        %v210 = vld [vmem:[%s192] sm:$0xff]
        %v211 = vld [vmem:[%s192 + $0x8] sm:$0x3f]
        %s212 = sld [smem:[#allocation2]]
        %v213 = vstv %s212
        %v214 = vmul.f32 %v210, %v213
        %v215 = vmul.f32 %v211, %v213
        %v216 = vadd.f32 %v199, %v214
        %v217 = vadd.f32 %v199, %v215
        %s218 = sld [smem:[#allocation2 + $0x1b]]
        %v219 = vstv %s218
        %v220 = vmul.f32 %v210, %v219
        %v221 = vmul.f32 %v211, %v219
        %v222 = vadd.f32 %v201, %v220
        %v223 = vadd.f32 %v201, %v221
        %s224 = sld [smem:[#allocation2 + $0x36]]
        %v225 = vstv %s224
        %v226 = vmul.f32 %v210, %v225
        %v227 = vmul.f32 %v211, %v225
        %v228 = vadd.f32 %v203, %v226
        %v229 = vadd.f32 %v203, %v227
        %s230 = sld [smem:[#allocation2 + $0x51]]
        %v231 = vstv %s230
        %v232 = vmul.f32 %v210, %v231
        %v233 = vmul.f32 %v211, %v231
        %v234 = vadd.f32 %v205, %v232
        %v235 = vadd.f32 %v205, %v233
        %s236 = sld [smem:[#allocation2 + $0x6c]]
        %v237 = vstv %s236
        %v238 = vmul.f32 %v210, %v237
        %v239 = vmul.f32 %v211, %v237
        %v240 = vadd.f32 %v207, %v238
        %v241 = vadd.f32 %v207, %v239
        %s242 = sld [smem:[#allocation2 + $0x87]]
        %v243 = vstv %s242
        %v244 = vmul.f32 %v210, %v243
        %v245 = vmul.f32 %v211, %v243
        %v246 = vadd.f32 %v209, %v244
        %v247 = vadd.f32 %v209, %v245
        %s248 = sld [smem:[#allocation2 + $0x1]]
        %v249 = vstv %s248
        %v250 = vmul.f32 %v210, %v249
        %v251 = vmul.f32 %v211, %v249
        %254 = vrot.lane.b32.xlu0 %v250, 127
        %v255 = vpop.permute.xlu0 %254
        %256 = vrot.lane.b32.xlu0 %v251, 127
        %v257 = vpop.permute.xlu0 %256
        %v260 = vadd.f32 %v216, %v255
        %v261 = vadd.f32 %v217, %v257
        %s262 = sld [smem:[#allocation2 + $0x1c]]
        %v263 = vstv %s262
        %v264 = vmul.f32 %v210, %v263
        %v265 = vmul.f32 %v211, %v263
        %268 = vrot.lane.b32.xlu0 %v264, 127
        %v269 = vpop.permute.xlu0 %268
        %270 = vrot.lane.b32.xlu0 %v265, 127
        %v271 = vpop.permute.xlu0 %270
        %v274 = vadd.f32 %v222, %v269
        %v275 = vadd.f32 %v223, %v271
        %s276 = sld [smem:[#allocation2 + $0x37]]
        %v277 = vstv %s276
        %v278 = vmul.f32 %v210, %v277
        %v279 = vmul.f32 %v211, %v277
        %282 = vrot.lane.b32.xlu0 %v278, 127
        %v283 = vpop.permute.xlu0 %282
        %284 = vrot.lane.b32.xlu0 %v279, 127
        %v285 = vpop.permute.xlu0 %284
        %v288 = vadd.f32 %v228, %v283
        %v289 = vadd.f32 %v229, %v285
        %s290 = sld [smem:[#allocation2 + $0x52]]
        %v291 = vstv %s290
        %v292 = vmul.f32 %v210, %v291
        %v293 = vmul.f32 %v211, %v291
        %296 = vrot.lane.b32.xlu0 %v292, 127
        %v297 = vpop.permute.xlu0 %296
        %298 = vrot.lane.b32.xlu0 %v293, 127
        %v299 = vpop.permute.xlu0 %298
        %v302 = vadd.f32 %v234, %v297
        %v303 = vadd.f32 %v235, %v299
        %s304 = sld [smem:[#allocation2 + $0x6d]]
        %v305 = vstv %s304
        %v306 = vmul.f32 %v210, %v305
        %v307 = vmul.f32 %v211, %v305
        %310 = vrot.lane.b32.xlu0 %v306, 127
        %v311 = vpop.permute.xlu0 %310
        %312 = vrot.lane.b32.xlu0 %v307, 127
        %v313 = vpop.permute.xlu0 %312
        %v316 = vadd.f32 %v240, %v311
        %v317 = vadd.f32 %v241, %v313
        %s318 = sld [smem:[#allocation2 + $0x88]]
        %v319 = vstv %s318
        %v320 = vmul.f32 %v210, %v319
        %v321 = vmul.f32 %v211, %v319
        %324 = vrot.lane.b32.xlu0 %v320, 127
        %v325 = vpop.permute.xlu0 %324
        %326 = vrot.lane.b32.xlu0 %v321, 127
        %v327 = vpop.permute.xlu0 %326
        %v330 = vadd.f32 %v246, %v325
        %v331 = vadd.f32 %v247, %v327
        %s332 = sld [smem:[#allocation2 + $0x2]]
        %v333 = vstv %s332
        %v334 = vmul.f32 %v210, %v333
        %v335 = vmul.f32 %v211, %v333
        %338 = vrot.lane.b32.xlu0 %v334, 126
        %v339 = vpop.permute.xlu0 %338
        %340 = vrot.lane.b32.xlu0 %v335, 126
        %v341 = vpop.permute.xlu0 %340
        %v344 = vadd.f32 %v260, %v339
        %v345 = vadd.f32 %v261, %v341
        %s346 = sld [smem:[#allocation2 + $0x1d]]
        %v347 = vstv %s346
        %v348 = vmul.f32 %v210, %v347
        %v349 = vmul.f32 %v211, %v347
        %352 = vrot.lane.b32.xlu0 %v348, 126
        %v353 = vpop.permute.xlu0 %352
        %354 = vrot.lane.b32.xlu0 %v349, 126
        %v355 = vpop.permute.xlu0 %354
        %v358 = vadd.f32 %v274, %v353
        %v359 = vadd.f32 %v275, %v355
        %s360 = sld [smem:[#allocation2 + $0x38]]
        %v361 = vstv %s360
        %v362 = vmul.f32 %v210, %v361
        %v363 = vmul.f32 %v211, %v361
        %366 = vrot.lane.b32.xlu0 %v362, 126
        %v367 = vpop.permute.xlu0 %366
        %368 = vrot.lane.b32.xlu0 %v363, 126
        %v369 = vpop.permute.xlu0 %368
        %v372 = vadd.f32 %v288, %v367
        %v373 = vadd.f32 %v289, %v369
        %s374 = sld [smem:[#allocation2 + $0x53]]
        %v375 = vstv %s374
        %v376 = vmul.f32 %v210, %v375
        %v377 = vmul.f32 %v211, %v375
        %380 = vrot.lane.b32.xlu0 %v376, 126
        %v381 = vpop.permute.xlu0 %380
        %382 = vrot.lane.b32.xlu0 %v377, 126
        %v383 = vpop.permute.xlu0 %382
        %v386 = vadd.f32 %v302, %v381
        %v387 = vadd.f32 %v303, %v383
        %s388 = sld [smem:[#allocation2 + $0x6e]]
        %v389 = vstv %s388
        %v390 = vmul.f32 %v210, %v389
        %v391 = vmul.f32 %v211, %v389
        %394 = vrot.lane.b32.xlu0 %v390, 126
        %v395 = vpop.permute.xlu0 %394
        %396 = vrot.lane.b32.xlu0 %v391, 126
        %v397 = vpop.permute.xlu0 %396
        %v400 = vadd.f32 %v316, %v395
        %v401 = vadd.f32 %v317, %v397
        %s402 = sld [smem:[#allocation2 + $0x89]]
        %v403 = vstv %s402
        %v404 = vmul.f32 %v210, %v403
        %v405 = vmul.f32 %v211, %v403
        %408 = vrot.lane.b32.xlu0 %v404, 126
        %v409 = vpop.permute.xlu0 %408
        %410 = vrot.lane.b32.xlu0 %v405, 126
        %v411 = vpop.permute.xlu0 %410
        %v414 = vadd.f32 %v330, %v409
        %v415 = vadd.f32 %v331, %v411
        %v416 = vld [vmem:[%s192 + $0x1] sm:$0xff]
        %v417 = vld [vmem:[%s192 + $0x9] sm:$0x3f]
        %s418 = sld [smem:[#allocation2 + $0x3]]
        %v419 = vstv %s418
        %v420 = vmul.f32 %v416, %v419
        %v421 = vmul.f32 %v417, %v419
        %v422 = vadd.f32 %v344, %v420
        %v423 = vadd.f32 %v345, %v421
        %s424 = sld [smem:[#allocation2 + $0x1e]]
        %v425 = vstv %s424
        %v426 = vmul.f32 %v416, %v425
        %v427 = vmul.f32 %v417, %v425
        %v428 = vadd.f32 %v358, %v426
        %v429 = vadd.f32 %v359, %v427
        %s430 = sld [smem:[#allocation2 + $0x39]]
        %v431 = vstv %s430
        %v432 = vmul.f32 %v416, %v431
        %v433 = vmul.f32 %v417, %v431
        %v434 = vadd.f32 %v372, %v432
        %v435 = vadd.f32 %v373, %v433
        %s436 = sld [smem:[#allocation2 + $0x54]]
        %v437 = vstv %s436
        %v438 = vmul.f32 %v416, %v437
        %v439 = vmul.f32 %v417, %v437
        %v440 = vadd.f32 %v386, %v438
        %v441 = vadd.f32 %v387, %v439
        %s442 = sld [smem:[#allocation2 + $0x6f]]
        %v443 = vstv %s442
        %v444 = vmul.f32 %v416, %v443
        %v445 = vmul.f32 %v417, %v443
        %v446 = vadd.f32 %v400, %v444
        %v447 = vadd.f32 %v401, %v445
        %s448 = sld [smem:[#allocation2 + $0x8a]]
        %v449 = vstv %s448
        %v450 = vmul.f32 %v416, %v449
        %v451 = vmul.f32 %v417, %v449
        %v452 = vadd.f32 %v414, %v450
        %v453 = vadd.f32 %v415, %v451
        %s454 = sld [smem:[#allocation2 + $0x4]]
        %v455 = vstv %s454
        %v456 = vmul.f32 %v416, %v455
        %v457 = vmul.f32 %v417, %v455
        %460 = vrot.lane.b32.xlu0 %v456, 127
        %v461 = vpop.permute.xlu0 %460
        %462 = vrot.lane.b32.xlu0 %v457, 127
        %v463 = vpop.permute.xlu0 %462
        %v466 = vadd.f32 %v422, %v461
        %v467 = vadd.f32 %v423, %v463
        %s468 = sld [smem:[#allocation2 + $0x1f]]
        %v469 = vstv %s468
        %v470 = vmul.f32 %v416, %v469
        %v471 = vmul.f32 %v417, %v469
        %474 = vrot.lane.b32.xlu0 %v470, 127
        %v475 = vpop.permute.xlu0 %474
        %476 = vrot.lane.b32.xlu0 %v471, 127
        %v477 = vpop.permute.xlu0 %476
        %v480 = vadd.f32 %v428, %v475
        %v481 = vadd.f32 %v429, %v477
        %s482 = sld [smem:[#allocation2 + $0x3a]]
        %v483 = vstv %s482
        %v484 = vmul.f32 %v416, %v483
        %v485 = vmul.f32 %v417, %v483
        %488 = vrot.lane.b32.xlu0 %v484, 127
        %v489 = vpop.permute.xlu0 %488
        %490 = vrot.lane.b32.xlu0 %v485, 127
        %v491 = vpop.permute.xlu0 %490
        %v494 = vadd.f32 %v434, %v489
        %v495 = vadd.f32 %v435, %v491
        %s496 = sld [smem:[#allocation2 + $0x55]]
        %v497 = vstv %s496
        %v498 = vmul.f32 %v416, %v497
        %v499 = vmul.f32 %v417, %v497
        %502 = vrot.lane.b32.xlu0 %v498, 127
        %v503 = vpop.permute.xlu0 %502
        %504 = vrot.lane.b32.xlu0 %v499, 127
        %v505 = vpop.permute.xlu0 %504
        %v508 = vadd.f32 %v440, %v503
        %v509 = vadd.f32 %v441, %v505
        %s510 = sld [smem:[#allocation2 + $0x70]]
        %v511 = vstv %s510
        %v512 = vmul.f32 %v416, %v511
        %v513 = vmul.f32 %v417, %v511
        %516 = vrot.lane.b32.xlu0 %v512, 127
        %v517 = vpop.permute.xlu0 %516
        %518 = vrot.lane.b32.xlu0 %v513, 127
        %v519 = vpop.permute.xlu0 %518
        %v522 = vadd.f32 %v446, %v517
        %v523 = vadd.f32 %v447, %v519
        %s524 = sld [smem:[#allocation2 + $0x8b]]
        %v525 = vstv %s524
        %v526 = vmul.f32 %v416, %v525
        %v527 = vmul.f32 %v417, %v525
        %530 = vrot.lane.b32.xlu0 %v526, 127
        %v531 = vpop.permute.xlu0 %530
        %532 = vrot.lane.b32.xlu0 %v527, 127
        %v533 = vpop.permute.xlu0 %532
        %v536 = vadd.f32 %v452, %v531
        %v537 = vadd.f32 %v453, %v533
        %s538 = sld [smem:[#allocation2 + $0x5]]
        %v539 = vstv %s538
        %v540 = vmul.f32 %v416, %v539
        %v541 = vmul.f32 %v417, %v539
        %544 = vrot.lane.b32.xlu0 %v540, 126
        %v545 = vpop.permute.xlu0 %544
        %546 = vrot.lane.b32.xlu0 %v541, 126
        %v547 = vpop.permute.xlu0 %546
        %v550 = vadd.f32 %v466, %v545
        %v551 = vadd.f32 %v467, %v547
        %s552 = sld [smem:[#allocation2 + $0x20]]
        %v553 = vstv %s552
        %v554 = vmul.f32 %v416, %v553
        %v555 = vmul.f32 %v417, %v553
        %558 = vrot.lane.b32.xlu0 %v554, 126
        %v559 = vpop.permute.xlu0 %558
        %560 = vrot.lane.b32.xlu0 %v555, 126
        %v561 = vpop.permute.xlu0 %560
        %v564 = vadd.f32 %v480, %v559
        %v565 = vadd.f32 %v481, %v561
        %s566 = sld [smem:[#allocation2 + $0x3b]]
        %v567 = vstv %s566
        %v568 = vmul.f32 %v416, %v567
        %v569 = vmul.f32 %v417, %v567
        %572 = vrot.lane.b32.xlu0 %v568, 126
        %v573 = vpop.permute.xlu0 %572
        %574 = vrot.lane.b32.xlu0 %v569, 126
        %v575 = vpop.permute.xlu0 %574
        %v578 = vadd.f32 %v494, %v573
        %v579 = vadd.f32 %v495, %v575
        %s580 = sld [smem:[#allocation2 + $0x56]]
        %v581 = vstv %s580
        %v582 = vmul.f32 %v416, %v581
        %v583 = vmul.f32 %v417, %v581
        %586 = vrot.lane.b32.xlu0 %v582, 126
        %v587 = vpop.permute.xlu0 %586
        %588 = vrot.lane.b32.xlu0 %v583, 126
        %v589 = vpop.permute.xlu0 %588
        %v592 = vadd.f32 %v508, %v587
        %v593 = vadd.f32 %v509, %v589
        %s594 = sld [smem:[#allocation2 + $0x71]]
        %v595 = vstv %s594
        %v596 = vmul.f32 %v416, %v595
        %v597 = vmul.f32 %v417, %v595
        %600 = vrot.lane.b32.xlu0 %v596, 126
        %v601 = vpop.permute.xlu0 %600
        %602 = vrot.lane.b32.xlu0 %v597, 126
        %v603 = vpop.permute.xlu0 %602
        %v606 = vadd.f32 %v522, %v601
        %v607 = vadd.f32 %v523, %v603
        %s608 = sld [smem:[#allocation2 + $0x8c]]
        %v609 = vstv %s608
        %v610 = vmul.f32 %v416, %v609
        %v611 = vmul.f32 %v417, %v609
        %614 = vrot.lane.b32.xlu0 %v610, 126
        %v615 = vpop.permute.xlu0 %614
        %616 = vrot.lane.b32.xlu0 %v611, 126
        %v617 = vpop.permute.xlu0 %616
        %v620 = vadd.f32 %v536, %v615
        %v621 = vadd.f32 %v537, %v617
        %v622 = vld [vmem:[%s192 + $0x2] sm:$0xff]
        %v623 = vld [vmem:[%s192 + $0xa] sm:$0x3f]
        %s624 = sld [smem:[#allocation2 + $0x6]]
        %v625 = vstv %s624
        %v626 = vmul.f32 %v622, %v625
        %v627 = vmul.f32 %v623, %v625
        %v628 = vadd.f32 %v550, %v626
        %v629 = vadd.f32 %v551, %v627
        %s630 = sld [smem:[#allocation2 + $0x21]]
        %v631 = vstv %s630
        %v632 = vmul.f32 %v622, %v631
        %v633 = vmul.f32 %v623, %v631
        %v634 = vadd.f32 %v564, %v632
        %v635 = vadd.f32 %v565, %v633
        %s636 = sld [smem:[#allocation2 + $0x3c]]
        %v637 = vstv %s636
        %v638 = vmul.f32 %v622, %v637
        %v639 = vmul.f32 %v623, %v637
        %v640 = vadd.f32 %v578, %v638
        %v641 = vadd.f32 %v579, %v639
        %s642 = sld [smem:[#allocation2 + $0x57]]
        %v643 = vstv %s642
        %v644 = vmul.f32 %v622, %v643
        %v645 = vmul.f32 %v623, %v643
        %v646 = vadd.f32 %v592, %v644
        %v647 = vadd.f32 %v593, %v645
        %s648 = sld [smem:[#allocation2 + $0x72]]
        %v649 = vstv %s648
        %v650 = vmul.f32 %v622, %v649
        %v651 = vmul.f32 %v623, %v649
        %v652 = vadd.f32 %v606, %v650
        %v653 = vadd.f32 %v607, %v651
        %s654 = sld [smem:[#allocation2 + $0x8d]]
        %v655 = vstv %s654
        %v656 = vmul.f32 %v622, %v655
        %v657 = vmul.f32 %v623, %v655
        %v658 = vadd.f32 %v620, %v656
        %v659 = vadd.f32 %v621, %v657
        %s660 = sld [smem:[#allocation2 + $0x7]]
        %v661 = vstv %s660
        %v662 = vmul.f32 %v622, %v661
        %v663 = vmul.f32 %v623, %v661
        %666 = vrot.lane.b32.xlu0 %v662, 127
        %v667 = vpop.permute.xlu0 %666
        %668 = vrot.lane.b32.xlu0 %v663, 127
        %v669 = vpop.permute.xlu0 %668
        %v672 = vadd.f32 %v628, %v667
        %v673 = vadd.f32 %v629, %v669
        %s674 = sld [smem:[#allocation2 + $0x22]]
        %v675 = vstv %s674
        %v676 = vmul.f32 %v622, %v675
        %v677 = vmul.f32 %v623, %v675
        %680 = vrot.lane.b32.xlu0 %v676, 127
        %v681 = vpop.permute.xlu0 %680
        %682 = vrot.lane.b32.xlu0 %v677, 127
        %v683 = vpop.permute.xlu0 %682
        %v686 = vadd.f32 %v634, %v681
        %v687 = vadd.f32 %v635, %v683
        %s688 = sld [smem:[#allocation2 + $0x3d]]
        %v689 = vstv %s688
        %v690 = vmul.f32 %v622, %v689
        %v691 = vmul.f32 %v623, %v689
        %694 = vrot.lane.b32.xlu0 %v690, 127
        %v695 = vpop.permute.xlu0 %694
        %696 = vrot.lane.b32.xlu0 %v691, 127
        %v697 = vpop.permute.xlu0 %696
        %v700 = vadd.f32 %v640, %v695
        %v701 = vadd.f32 %v641, %v697
        %s702 = sld [smem:[#allocation2 + $0x58]]
        %v703 = vstv %s702
        %v704 = vmul.f32 %v622, %v703
        %v705 = vmul.f32 %v623, %v703
        %708 = vrot.lane.b32.xlu0 %v704, 127
        %v709 = vpop.permute.xlu0 %708
        %710 = vrot.lane.b32.xlu0 %v705, 127
        %v711 = vpop.permute.xlu0 %710
        %v714 = vadd.f32 %v646, %v709
        %v715 = vadd.f32 %v647, %v711
        %s716 = sld [smem:[#allocation2 + $0x73]]
        %v717 = vstv %s716
        %v718 = vmul.f32 %v622, %v717
        %v719 = vmul.f32 %v623, %v717
        %722 = vrot.lane.b32.xlu0 %v718, 127
        %v723 = vpop.permute.xlu0 %722
        %724 = vrot.lane.b32.xlu0 %v719, 127
        %v725 = vpop.permute.xlu0 %724
        %v728 = vadd.f32 %v652, %v723
        %v729 = vadd.f32 %v653, %v725
        %s730 = sld [smem:[#allocation2 + $0x8e]]
        %v731 = vstv %s730
        %v732 = vmul.f32 %v622, %v731
        %v733 = vmul.f32 %v623, %v731
        %736 = vrot.lane.b32.xlu0 %v732, 127
        %v737 = vpop.permute.xlu0 %736
        %738 = vrot.lane.b32.xlu0 %v733, 127
        %v739 = vpop.permute.xlu0 %738
        %v742 = vadd.f32 %v658, %v737
        %v743 = vadd.f32 %v659, %v739
        %s744 = sld [smem:[#allocation2 + $0x8]]
        %v745 = vstv %s744
        %v746 = vmul.f32 %v622, %v745
        %v747 = vmul.f32 %v623, %v745
        %750 = vrot.lane.b32.xlu0 %v746, 126
        %v751 = vpop.permute.xlu0 %750
        %752 = vrot.lane.b32.xlu0 %v747, 126
        %v753 = vpop.permute.xlu0 %752
        %v756 = vadd.f32 %v672, %v751
        %v757 = vadd.f32 %v673, %v753
        %s758 = sld [smem:[#allocation2 + $0x23]]
        %v759 = vstv %s758
        %v760 = vmul.f32 %v622, %v759
        %v761 = vmul.f32 %v623, %v759
        %764 = vrot.lane.b32.xlu0 %v760, 126
        %v765 = vpop.permute.xlu0 %764
        %766 = vrot.lane.b32.xlu0 %v761, 126
        %v767 = vpop.permute.xlu0 %766
        %v770 = vadd.f32 %v686, %v765
        %v771 = vadd.f32 %v687, %v767
        %s772 = sld [smem:[#allocation2 + $0x3e]]
        %v773 = vstv %s772
        %v774 = vmul.f32 %v622, %v773
        %v775 = vmul.f32 %v623, %v773
        %778 = vrot.lane.b32.xlu0 %v774, 126
        %v779 = vpop.permute.xlu0 %778
        %780 = vrot.lane.b32.xlu0 %v775, 126
        %v781 = vpop.permute.xlu0 %780
        %v784 = vadd.f32 %v700, %v779
        %v785 = vadd.f32 %v701, %v781
        %s786 = sld [smem:[#allocation2 + $0x59]]
        %v787 = vstv %s786
        %v788 = vmul.f32 %v622, %v787
        %v789 = vmul.f32 %v623, %v787
        %792 = vrot.lane.b32.xlu0 %v788, 126
        %v793 = vpop.permute.xlu0 %792
        %794 = vrot.lane.b32.xlu0 %v789, 126
        %v795 = vpop.permute.xlu0 %794
        %v798 = vadd.f32 %v714, %v793
        %v799 = vadd.f32 %v715, %v795
        %s800 = sld [smem:[#allocation2 + $0x74]]
        %v801 = vstv %s800
        %v802 = vmul.f32 %v622, %v801
        %v803 = vmul.f32 %v623, %v801
        %806 = vrot.lane.b32.xlu0 %v802, 126
        %v807 = vpop.permute.xlu0 %806
        %808 = vrot.lane.b32.xlu0 %v803, 126
        %v809 = vpop.permute.xlu0 %808
        %v812 = vadd.f32 %v728, %v807
        %v813 = vadd.f32 %v729, %v809
        %s814 = sld [smem:[#allocation2 + $0x8f]]
        %v815 = vstv %s814
        %v816 = vmul.f32 %v622, %v815
        %v817 = vmul.f32 %v623, %v815
        %820 = vrot.lane.b32.xlu0 %v816, 126
        %v821 = vpop.permute.xlu0 %820
        %822 = vrot.lane.b32.xlu0 %v817, 126
        %v823 = vpop.permute.xlu0 %822
        %v826 = vadd.f32 %v742, %v821
        %v827 = vadd.f32 %v743, %v823
        %s828 = scalar_lea.vmem %s192, 16
        %v829 = vld [vmem:[%s828] sm:$0xff]
        %v830 = vld [vmem:[%s828 + $0x8] sm:$0x3f]
        %s831 = sld [smem:[#allocation2 + $0x9]]
        %v832 = vstv %s831
        %v833 = vmul.f32 %v829, %v832
        %v834 = vmul.f32 %v830, %v832
        %v835 = vadd.f32 %v756, %v833
        %v836 = vadd.f32 %v757, %v834
        %s837 = sld [smem:[#allocation2 + $0x24]]
        %v838 = vstv %s837
        %v839 = vmul.f32 %v829, %v838
        %v840 = vmul.f32 %v830, %v838
        %v841 = vadd.f32 %v770, %v839
        %v842 = vadd.f32 %v771, %v840
        %s843 = sld [smem:[#allocation2 + $0x3f]]
        %v844 = vstv %s843
        %v845 = vmul.f32 %v829, %v844
        %v846 = vmul.f32 %v830, %v844
        %v847 = vadd.f32 %v784, %v845
        %v848 = vadd.f32 %v785, %v846
        %s849 = sld [smem:[#allocation2 + $0x5a]]
        %v850 = vstv %s849
        %v851 = vmul.f32 %v829, %v850
        %v852 = vmul.f32 %v830, %v850
        %v853 = vadd.f32 %v798, %v851
        %v854 = vadd.f32 %v799, %v852
        %s855 = sld [smem:[#allocation2 + $0x75]]
        %v856 = vstv %s855
        %v857 = vmul.f32 %v829, %v856
        %v858 = vmul.f32 %v830, %v856
        %v859 = vadd.f32 %v812, %v857
        %v860 = vadd.f32 %v813, %v858
        %s861 = sld [smem:[#allocation2 + $0x90]]
        %v862 = vstv %s861
        %v863 = vmul.f32 %v829, %v862
        %v864 = vmul.f32 %v830, %v862
        %v865 = vadd.f32 %v826, %v863
        %v866 = vadd.f32 %v827, %v864
        %s867 = sld [smem:[#allocation2 + $0xa]]
        %v868 = vstv %s867
        %v869 = vmul.f32 %v829, %v868
        %v870 = vmul.f32 %v830, %v868
        %873 = vrot.lane.b32.xlu0 %v869, 127
        %v874 = vpop.permute.xlu0 %873
        %875 = vrot.lane.b32.xlu0 %v870, 127
        %v876 = vpop.permute.xlu0 %875
        %v879 = vadd.f32 %v835, %v874
        %v880 = vadd.f32 %v836, %v876
        %s881 = sld [smem:[#allocation2 + $0x25]]
        %v882 = vstv %s881
        %v883 = vmul.f32 %v829, %v882
        %v884 = vmul.f32 %v830, %v882
        %887 = vrot.lane.b32.xlu0 %v883, 127
        %v888 = vpop.permute.xlu0 %887
        %889 = vrot.lane.b32.xlu0 %v884, 127
        %v890 = vpop.permute.xlu0 %889
        %v893 = vadd.f32 %v841, %v888
        %v894 = vadd.f32 %v842, %v890
        %s895 = sld [smem:[#allocation2 + $0x40]]
        %v896 = vstv %s895
        %v897 = vmul.f32 %v829, %v896
        %v898 = vmul.f32 %v830, %v896
        %901 = vrot.lane.b32.xlu0 %v897, 127
        %v902 = vpop.permute.xlu0 %901
        %903 = vrot.lane.b32.xlu0 %v898, 127
        %v904 = vpop.permute.xlu0 %903
        %v907 = vadd.f32 %v847, %v902
        %v908 = vadd.f32 %v848, %v904
        %s909 = sld [smem:[#allocation2 + $0x5b]]
        %v910 = vstv %s909
        %v911 = vmul.f32 %v829, %v910
        %v912 = vmul.f32 %v830, %v910
        %915 = vrot.lane.b32.xlu0 %v911, 127
        %v916 = vpop.permute.xlu0 %915
        %917 = vrot.lane.b32.xlu0 %v912, 127
        %v918 = vpop.permute.xlu0 %917
        %v921 = vadd.f32 %v853, %v916
        %v922 = vadd.f32 %v854, %v918
        %s923 = sld [smem:[#allocation2 + $0x76]]
        %v924 = vstv %s923
        %v925 = vmul.f32 %v829, %v924
        %v926 = vmul.f32 %v830, %v924
        %929 = vrot.lane.b32.xlu0 %v925, 127
        %v930 = vpop.permute.xlu0 %929
        %931 = vrot.lane.b32.xlu0 %v926, 127
        %v932 = vpop.permute.xlu0 %931
        %v935 = vadd.f32 %v859, %v930
        %v936 = vadd.f32 %v860, %v932
        %s937 = sld [smem:[#allocation2 + $0x91]]
        %v938 = vstv %s937
        %v939 = vmul.f32 %v829, %v938
        %v940 = vmul.f32 %v830, %v938
        %943 = vrot.lane.b32.xlu0 %v939, 127
        %v944 = vpop.permute.xlu0 %943
        %945 = vrot.lane.b32.xlu0 %v940, 127
        %v946 = vpop.permute.xlu0 %945
        %v949 = vadd.f32 %v865, %v944
        %v950 = vadd.f32 %v866, %v946
        %s951 = sld [smem:[#allocation2 + $0xb]]
        %v952 = vstv %s951
        %v953 = vmul.f32 %v829, %v952
        %v954 = vmul.f32 %v830, %v952
        %957 = vrot.lane.b32.xlu0 %v953, 126
        %v958 = vpop.permute.xlu0 %957
        %959 = vrot.lane.b32.xlu0 %v954, 126
        %v960 = vpop.permute.xlu0 %959
        %v963 = vadd.f32 %v879, %v958
        %v964 = vadd.f32 %v880, %v960
        %s965 = sld [smem:[#allocation2 + $0x26]]
        %v966 = vstv %s965
        %v967 = vmul.f32 %v829, %v966
        %v968 = vmul.f32 %v830, %v966
        %971 = vrot.lane.b32.xlu0 %v967, 126
        %v972 = vpop.permute.xlu0 %971
        %973 = vrot.lane.b32.xlu0 %v968, 126
        %v974 = vpop.permute.xlu0 %973
        %v977 = vadd.f32 %v893, %v972
        %v978 = vadd.f32 %v894, %v974
        %s979 = sld [smem:[#allocation2 + $0x41]]
        %v980 = vstv %s979
        %v981 = vmul.f32 %v829, %v980
        %v982 = vmul.f32 %v830, %v980
        %985 = vrot.lane.b32.xlu0 %v981, 126
        %v986 = vpop.permute.xlu0 %985
        %987 = vrot.lane.b32.xlu0 %v982, 126
        %v988 = vpop.permute.xlu0 %987
        %v991 = vadd.f32 %v907, %v986
        %v992 = vadd.f32 %v908, %v988
        %s993 = sld [smem:[#allocation2 + $0x5c]]
        %v994 = vstv %s993
        %v995 = vmul.f32 %v829, %v994
        %v996 = vmul.f32 %v830, %v994
        %999 = vrot.lane.b32.xlu0 %v995, 126
        %v1000 = vpop.permute.xlu0 %999
        %1001 = vrot.lane.b32.xlu0 %v996, 126
        %v1002 = vpop.permute.xlu0 %1001
        %v1005 = vadd.f32 %v921, %v1000
        %v1006 = vadd.f32 %v922, %v1002
        %s1007 = sld [smem:[#allocation2 + $0x77]]
        %v1008 = vstv %s1007
        %v1009 = vmul.f32 %v829, %v1008
        %v1010 = vmul.f32 %v830, %v1008
        %1013 = vrot.lane.b32.xlu0 %v1009, 126
        %v1014 = vpop.permute.xlu0 %1013
        %1015 = vrot.lane.b32.xlu0 %v1010, 126
        %v1016 = vpop.permute.xlu0 %1015
        %v1019 = vadd.f32 %v935, %v1014
        %v1020 = vadd.f32 %v936, %v1016
        %s1021 = sld [smem:[#allocation2 + $0x92]]
        %v1022 = vstv %s1021
        %v1023 = vmul.f32 %v829, %v1022
        %v1024 = vmul.f32 %v830, %v1022
        %1027 = vrot.lane.b32.xlu0 %v1023, 126
        %v1028 = vpop.permute.xlu0 %1027
        %1029 = vrot.lane.b32.xlu0 %v1024, 126
        %v1030 = vpop.permute.xlu0 %1029
        %v1033 = vadd.f32 %v949, %v1028
        %v1034 = vadd.f32 %v950, %v1030
        %v1035 = vld [vmem:[%s828 + $0x1] sm:$0xff]
        %v1036 = vld [vmem:[%s828 + $0x9] sm:$0x3f]
        %s1037 = sld [smem:[#allocation2 + $0xc]]
        %v1038 = vstv %s1037
        %v1039 = vmul.f32 %v1035, %v1038
        %v1040 = vmul.f32 %v1036, %v1038
        %v1041 = vadd.f32 %v963, %v1039
        %v1042 = vadd.f32 %v964, %v1040
        %s1043 = sld [smem:[#allocation2 + $0x27]]
        %v1044 = vstv %s1043
        %v1045 = vmul.f32 %v1035, %v1044
        %v1046 = vmul.f32 %v1036, %v1044
        %v1047 = vadd.f32 %v977, %v1045
        %v1048 = vadd.f32 %v978, %v1046
        %s1049 = sld [smem:[#allocation2 + $0x42]]
        %v1050 = vstv %s1049
        %v1051 = vmul.f32 %v1035, %v1050
        %v1052 = vmul.f32 %v1036, %v1050
        %v1053 = vadd.f32 %v991, %v1051
        %v1054 = vadd.f32 %v992, %v1052
        %s1055 = sld [smem:[#allocation2 + $0x5d]]
        %v1056 = vstv %s1055
        %v1057 = vmul.f32 %v1035, %v1056
        %v1058 = vmul.f32 %v1036, %v1056
        %v1059 = vadd.f32 %v1005, %v1057
        %v1060 = vadd.f32 %v1006, %v1058
        %s1061 = sld [smem:[#allocation2 + $0x78]]
        %v1062 = vstv %s1061
        %v1063 = vmul.f32 %v1035, %v1062
        %v1064 = vmul.f32 %v1036, %v1062
        %v1065 = vadd.f32 %v1019, %v1063
        %v1066 = vadd.f32 %v1020, %v1064
        %s1067 = sld [smem:[#allocation2 + $0x93]]
        %v1068 = vstv %s1067
        %v1069 = vmul.f32 %v1035, %v1068
        %v1070 = vmul.f32 %v1036, %v1068
        %v1071 = vadd.f32 %v1033, %v1069
        %v1072 = vadd.f32 %v1034, %v1070
        %s1073 = sld [smem:[#allocation2 + $0xd]]
        %v1074 = vstv %s1073
        %v1075 = vmul.f32 %v1035, %v1074
        %v1076 = vmul.f32 %v1036, %v1074
        %1079 = vrot.lane.b32.xlu0 %v1075, 127
        %v1080 = vpop.permute.xlu0 %1079
        %1081 = vrot.lane.b32.xlu0 %v1076, 127
        %v1082 = vpop.permute.xlu0 %1081
        %v1085 = vadd.f32 %v1041, %v1080
        %v1086 = vadd.f32 %v1042, %v1082
        %s1087 = sld [smem:[#allocation2 + $0x28]]
        %v1088 = vstv %s1087
        %v1089 = vmul.f32 %v1035, %v1088
        %v1090 = vmul.f32 %v1036, %v1088
        %1093 = vrot.lane.b32.xlu0 %v1089, 127
        %v1094 = vpop.permute.xlu0 %1093
        %1095 = vrot.lane.b32.xlu0 %v1090, 127
        %v1096 = vpop.permute.xlu0 %1095
        %v1099 = vadd.f32 %v1047, %v1094
        %v1100 = vadd.f32 %v1048, %v1096
        %s1101 = sld [smem:[#allocation2 + $0x43]]
        %v1102 = vstv %s1101
        %v1103 = vmul.f32 %v1035, %v1102
        %v1104 = vmul.f32 %v1036, %v1102
        %1107 = vrot.lane.b32.xlu0 %v1103, 127
        %v1108 = vpop.permute.xlu0 %1107
        %1109 = vrot.lane.b32.xlu0 %v1104, 127
        %v1110 = vpop.permute.xlu0 %1109
        %v1113 = vadd.f32 %v1053, %v1108
        %v1114 = vadd.f32 %v1054, %v1110
        %s1115 = sld [smem:[#allocation2 + $0x5e]]
        %v1116 = vstv %s1115
        %v1117 = vmul.f32 %v1035, %v1116
        %v1118 = vmul.f32 %v1036, %v1116
        %1121 = vrot.lane.b32.xlu0 %v1117, 127
        %v1122 = vpop.permute.xlu0 %1121
        %1123 = vrot.lane.b32.xlu0 %v1118, 127
        %v1124 = vpop.permute.xlu0 %1123
        %v1127 = vadd.f32 %v1059, %v1122
        %v1128 = vadd.f32 %v1060, %v1124
        %s1129 = sld [smem:[#allocation2 + $0x79]]
        %v1130 = vstv %s1129
        %v1131 = vmul.f32 %v1035, %v1130
        %v1132 = vmul.f32 %v1036, %v1130
        %1135 = vrot.lane.b32.xlu0 %v1131, 127
        %v1136 = vpop.permute.xlu0 %1135
        %1137 = vrot.lane.b32.xlu0 %v1132, 127
        %v1138 = vpop.permute.xlu0 %1137
        %v1141 = vadd.f32 %v1065, %v1136
        %v1142 = vadd.f32 %v1066, %v1138
        %s1143 = sld [smem:[#allocation2 + $0x94]]
        %v1144 = vstv %s1143
        %v1145 = vmul.f32 %v1035, %v1144
        %v1146 = vmul.f32 %v1036, %v1144
        %1149 = vrot.lane.b32.xlu0 %v1145, 127
        %v1150 = vpop.permute.xlu0 %1149
        %1151 = vrot.lane.b32.xlu0 %v1146, 127
        %v1152 = vpop.permute.xlu0 %1151
        %v1155 = vadd.f32 %v1071, %v1150
        %v1156 = vadd.f32 %v1072, %v1152
        %s1157 = sld [smem:[#allocation2 + $0xe]]
        %v1158 = vstv %s1157
        %v1159 = vmul.f32 %v1035, %v1158
        %v1160 = vmul.f32 %v1036, %v1158
        %1163 = vrot.lane.b32.xlu0 %v1159, 126
        %v1164 = vpop.permute.xlu0 %1163
        %1165 = vrot.lane.b32.xlu0 %v1160, 126
        %v1166 = vpop.permute.xlu0 %1165
        %v1169 = vadd.f32 %v1085, %v1164
        %v1170 = vadd.f32 %v1086, %v1166
        %s1171 = sld [smem:[#allocation2 + $0x29]]
        %v1172 = vstv %s1171
        %v1173 = vmul.f32 %v1035, %v1172
        %v1174 = vmul.f32 %v1036, %v1172
        %1177 = vrot.lane.b32.xlu0 %v1173, 126
        %v1178 = vpop.permute.xlu0 %1177
        %1179 = vrot.lane.b32.xlu0 %v1174, 126
        %v1180 = vpop.permute.xlu0 %1179
        %v1183 = vadd.f32 %v1099, %v1178
        %v1184 = vadd.f32 %v1100, %v1180
        %s1185 = sld [smem:[#allocation2 + $0x44]]
        %v1186 = vstv %s1185
        %v1187 = vmul.f32 %v1035, %v1186
        %v1188 = vmul.f32 %v1036, %v1186
        %1191 = vrot.lane.b32.xlu0 %v1187, 126
        %v1192 = vpop.permute.xlu0 %1191
        %1193 = vrot.lane.b32.xlu0 %v1188, 126
        %v1194 = vpop.permute.xlu0 %1193
        %v1197 = vadd.f32 %v1113, %v1192
        %v1198 = vadd.f32 %v1114, %v1194
        %s1199 = sld [smem:[#allocation2 + $0x5f]]
        %v1200 = vstv %s1199
        %v1201 = vmul.f32 %v1035, %v1200
        %v1202 = vmul.f32 %v1036, %v1200
        %1205 = vrot.lane.b32.xlu0 %v1201, 126
        %v1206 = vpop.permute.xlu0 %1205
        %1207 = vrot.lane.b32.xlu0 %v1202, 126
        %v1208 = vpop.permute.xlu0 %1207
        %v1211 = vadd.f32 %v1127, %v1206
        %v1212 = vadd.f32 %v1128, %v1208
        %s1213 = sld [smem:[#allocation2 + $0x7a]]
        %v1214 = vstv %s1213
        %v1215 = vmul.f32 %v1035, %v1214
        %v1216 = vmul.f32 %v1036, %v1214
        %1219 = vrot.lane.b32.xlu0 %v1215, 126
        %v1220 = vpop.permute.xlu0 %1219
        %1221 = vrot.lane.b32.xlu0 %v1216, 126
        %v1222 = vpop.permute.xlu0 %1221
        %v1225 = vadd.f32 %v1141, %v1220
        %v1226 = vadd.f32 %v1142, %v1222
        %s1227 = sld [smem:[#allocation2 + $0x95]]
        %v1228 = vstv %s1227
        %v1229 = vmul.f32 %v1035, %v1228
        %v1230 = vmul.f32 %v1036, %v1228
        %1233 = vrot.lane.b32.xlu0 %v1229, 126
        %v1234 = vpop.permute.xlu0 %1233
        %1235 = vrot.lane.b32.xlu0 %v1230, 126
        %v1236 = vpop.permute.xlu0 %1235
        %v1239 = vadd.f32 %v1155, %v1234
        %v1240 = vadd.f32 %v1156, %v1236
        %v1241 = vld [vmem:[%s828 + $0x2] sm:$0xff]
        %v1242 = vld [vmem:[%s828 + $0xa] sm:$0x3f]
        %s1243 = sld [smem:[#allocation2 + $0xf]]
        %v1244 = vstv %s1243
        %v1245 = vmul.f32 %v1241, %v1244
        %v1246 = vmul.f32 %v1242, %v1244
        %v1247 = vadd.f32 %v1169, %v1245
        %v1248 = vadd.f32 %v1170, %v1246
        %s1249 = sld [smem:[#allocation2 + $0x2a]]
        %v1250 = vstv %s1249
        %v1251 = vmul.f32 %v1241, %v1250
        %v1252 = vmul.f32 %v1242, %v1250
        %v1253 = vadd.f32 %v1183, %v1251
        %v1254 = vadd.f32 %v1184, %v1252
        %s1255 = sld [smem:[#allocation2 + $0x45]]
        %v1256 = vstv %s1255
        %v1257 = vmul.f32 %v1241, %v1256
        %v1258 = vmul.f32 %v1242, %v1256
        %v1259 = vadd.f32 %v1197, %v1257
        %v1260 = vadd.f32 %v1198, %v1258
        %s1261 = sld [smem:[#allocation2 + $0x60]]
        %v1262 = vstv %s1261
        %v1263 = vmul.f32 %v1241, %v1262
        %v1264 = vmul.f32 %v1242, %v1262
        %v1265 = vadd.f32 %v1211, %v1263
        %v1266 = vadd.f32 %v1212, %v1264
        %s1267 = sld [smem:[#allocation2 + $0x7b]]
        %v1268 = vstv %s1267
        %v1269 = vmul.f32 %v1241, %v1268
        %v1270 = vmul.f32 %v1242, %v1268
        %v1271 = vadd.f32 %v1225, %v1269
        %v1272 = vadd.f32 %v1226, %v1270
        %s1273 = sld [smem:[#allocation2 + $0x96]]
        %v1274 = vstv %s1273
        %v1275 = vmul.f32 %v1241, %v1274
        %v1276 = vmul.f32 %v1242, %v1274
        %v1277 = vadd.f32 %v1239, %v1275
        %v1278 = vadd.f32 %v1240, %v1276
        %s1279 = sld [smem:[#allocation2 + $0x10]]
        %v1280 = vstv %s1279
        %v1281 = vmul.f32 %v1241, %v1280
        %v1282 = vmul.f32 %v1242, %v1280
        %1285 = vrot.lane.b32.xlu0 %v1281, 127
        %v1286 = vpop.permute.xlu0 %1285
        %1287 = vrot.lane.b32.xlu0 %v1282, 127
        %v1288 = vpop.permute.xlu0 %1287
        %v1291 = vadd.f32 %v1247, %v1286
        %v1292 = vadd.f32 %v1248, %v1288
        %s1293 = sld [smem:[#allocation2 + $0x2b]]
        %v1294 = vstv %s1293
        %v1295 = vmul.f32 %v1241, %v1294
        %v1296 = vmul.f32 %v1242, %v1294
        %1299 = vrot.lane.b32.xlu0 %v1295, 127
        %v1300 = vpop.permute.xlu0 %1299
        %1301 = vrot.lane.b32.xlu0 %v1296, 127
        %v1302 = vpop.permute.xlu0 %1301
        %v1305 = vadd.f32 %v1253, %v1300
        %v1306 = vadd.f32 %v1254, %v1302
        %s1307 = sld [smem:[#allocation2 + $0x46]]
        %v1308 = vstv %s1307
        %v1309 = vmul.f32 %v1241, %v1308
        %v1310 = vmul.f32 %v1242, %v1308
        %1313 = vrot.lane.b32.xlu0 %v1309, 127
        %v1314 = vpop.permute.xlu0 %1313
        %1315 = vrot.lane.b32.xlu0 %v1310, 127
        %v1316 = vpop.permute.xlu0 %1315
        %v1319 = vadd.f32 %v1259, %v1314
        %v1320 = vadd.f32 %v1260, %v1316
        %s1321 = sld [smem:[#allocation2 + $0x61]]
        %v1322 = vstv %s1321
        %v1323 = vmul.f32 %v1241, %v1322
        %v1324 = vmul.f32 %v1242, %v1322
        %1327 = vrot.lane.b32.xlu0 %v1323, 127
        %v1328 = vpop.permute.xlu0 %1327
        %1329 = vrot.lane.b32.xlu0 %v1324, 127
        %v1330 = vpop.permute.xlu0 %1329
        %v1333 = vadd.f32 %v1265, %v1328
        %v1334 = vadd.f32 %v1266, %v1330
        %s1335 = sld [smem:[#allocation2 + $0x7c]]
        %v1336 = vstv %s1335
        %v1337 = vmul.f32 %v1241, %v1336
        %v1338 = vmul.f32 %v1242, %v1336
        %1341 = vrot.lane.b32.xlu0 %v1337, 127
        %v1342 = vpop.permute.xlu0 %1341
        %1343 = vrot.lane.b32.xlu0 %v1338, 127
        %v1344 = vpop.permute.xlu0 %1343
        %v1347 = vadd.f32 %v1271, %v1342
        %v1348 = vadd.f32 %v1272, %v1344
        %s1349 = sld [smem:[#allocation2 + $0x97]]
        %v1350 = vstv %s1349
        %v1351 = vmul.f32 %v1241, %v1350
        %v1352 = vmul.f32 %v1242, %v1350
        %1355 = vrot.lane.b32.xlu0 %v1351, 127
        %v1356 = vpop.permute.xlu0 %1355
        %1357 = vrot.lane.b32.xlu0 %v1352, 127
        %v1358 = vpop.permute.xlu0 %1357
        %v1361 = vadd.f32 %v1277, %v1356
        %v1362 = vadd.f32 %v1278, %v1358
        %s1363 = sld [smem:[#allocation2 + $0x11]]
        %v1364 = vstv %s1363
        %v1365 = vmul.f32 %v1241, %v1364
        %v1366 = vmul.f32 %v1242, %v1364
        %1369 = vrot.lane.b32.xlu0 %v1365, 126
        %v1370 = vpop.permute.xlu0 %1369
        %1371 = vrot.lane.b32.xlu0 %v1366, 126
        %v1372 = vpop.permute.xlu0 %1371
        %v1375 = vadd.f32 %v1291, %v1370
        %v1376 = vadd.f32 %v1292, %v1372
        %s1377 = sld [smem:[#allocation2 + $0x2c]]
        %v1378 = vstv %s1377
        %v1379 = vmul.f32 %v1241, %v1378
        %v1380 = vmul.f32 %v1242, %v1378
        %1383 = vrot.lane.b32.xlu0 %v1379, 126
        %v1384 = vpop.permute.xlu0 %1383
        %1385 = vrot.lane.b32.xlu0 %v1380, 126
        %v1386 = vpop.permute.xlu0 %1385
        %v1389 = vadd.f32 %v1305, %v1384
        %v1390 = vadd.f32 %v1306, %v1386
        %s1391 = sld [smem:[#allocation2 + $0x47]]
        %v1392 = vstv %s1391
        %v1393 = vmul.f32 %v1241, %v1392
        %v1394 = vmul.f32 %v1242, %v1392
        %1397 = vrot.lane.b32.xlu0 %v1393, 126
        %v1398 = vpop.permute.xlu0 %1397
        %1399 = vrot.lane.b32.xlu0 %v1394, 126
        %v1400 = vpop.permute.xlu0 %1399
        %v1403 = vadd.f32 %v1319, %v1398
        %v1404 = vadd.f32 %v1320, %v1400
        %s1405 = sld [smem:[#allocation2 + $0x62]]
        %v1406 = vstv %s1405
        %v1407 = vmul.f32 %v1241, %v1406
        %v1408 = vmul.f32 %v1242, %v1406
        %1411 = vrot.lane.b32.xlu0 %v1407, 126
        %v1412 = vpop.permute.xlu0 %1411
        %1413 = vrot.lane.b32.xlu0 %v1408, 126
        %v1414 = vpop.permute.xlu0 %1413
        %v1417 = vadd.f32 %v1333, %v1412
        %v1418 = vadd.f32 %v1334, %v1414
        %s1419 = sld [smem:[#allocation2 + $0x7d]]
        %v1420 = vstv %s1419
        %v1421 = vmul.f32 %v1241, %v1420
        %v1422 = vmul.f32 %v1242, %v1420
        %1425 = vrot.lane.b32.xlu0 %v1421, 126
        %v1426 = vpop.permute.xlu0 %1425
        %1427 = vrot.lane.b32.xlu0 %v1422, 126
        %v1428 = vpop.permute.xlu0 %1427
        %v1431 = vadd.f32 %v1347, %v1426
        %v1432 = vadd.f32 %v1348, %v1428
        %s1433 = sld [smem:[#allocation2 + $0x98]]
        %v1434 = vstv %s1433
        %v1435 = vmul.f32 %v1241, %v1434
        %v1436 = vmul.f32 %v1242, %v1434
        %1439 = vrot.lane.b32.xlu0 %v1435, 126
        %v1440 = vpop.permute.xlu0 %1439
        %1441 = vrot.lane.b32.xlu0 %v1436, 126
        %v1442 = vpop.permute.xlu0 %1441
        %v1445 = vadd.f32 %v1361, %v1440
        %v1446 = vadd.f32 %v1362, %v1442
        %s1447 = scalar_lea.vmem %s192, 32
        %v1448 = vld [vmem:[%s1447] sm:$0xff]
        %v1449 = vld [vmem:[%s1447 + $0x8] sm:$0x3f]
        %s1450 = sld [smem:[#allocation2 + $0x12]]
        %v1451 = vstv %s1450
        %v1452 = vmul.f32 %v1448, %v1451
        %v1453 = vmul.f32 %v1449, %v1451
        %v1454 = vadd.f32 %v1375, %v1452
        %v1455 = vadd.f32 %v1376, %v1453
        %s1456 = sld [smem:[#allocation2 + $0x2d]]
        %v1457 = vstv %s1456
        %v1458 = vmul.f32 %v1448, %v1457
        %v1459 = vmul.f32 %v1449, %v1457
        %v1460 = vadd.f32 %v1389, %v1458
        %v1461 = vadd.f32 %v1390, %v1459
        %s1462 = sld [smem:[#allocation2 + $0x48]]
        %v1463 = vstv %s1462
        %v1464 = vmul.f32 %v1448, %v1463
        %v1465 = vmul.f32 %v1449, %v1463
        %v1466 = vadd.f32 %v1403, %v1464
        %v1467 = vadd.f32 %v1404, %v1465
        %s1468 = sld [smem:[#allocation2 + $0x63]]
        %v1469 = vstv %s1468
        %v1470 = vmul.f32 %v1448, %v1469
        %v1471 = vmul.f32 %v1449, %v1469
        %v1472 = vadd.f32 %v1417, %v1470
        %v1473 = vadd.f32 %v1418, %v1471
        %s1474 = sld [smem:[#allocation2 + $0x7e]]
        %v1475 = vstv %s1474
        %v1476 = vmul.f32 %v1448, %v1475
        %v1477 = vmul.f32 %v1449, %v1475
        %v1478 = vadd.f32 %v1431, %v1476
        %v1479 = vadd.f32 %v1432, %v1477
        %s1480 = sld [smem:[#allocation2 + $0x99]]
        %v1481 = vstv %s1480
        %v1482 = vmul.f32 %v1448, %v1481
        %v1483 = vmul.f32 %v1449, %v1481
        %v1484 = vadd.f32 %v1445, %v1482
        %v1485 = vadd.f32 %v1446, %v1483
        %s1486 = sld [smem:[#allocation2 + $0x13]]
        %v1487 = vstv %s1486
        %v1488 = vmul.f32 %v1448, %v1487
        %v1489 = vmul.f32 %v1449, %v1487
        %1492 = vrot.lane.b32.xlu0 %v1488, 127
        %v1493 = vpop.permute.xlu0 %1492
        %1494 = vrot.lane.b32.xlu0 %v1489, 127
        %v1495 = vpop.permute.xlu0 %1494
        %v1498 = vadd.f32 %v1454, %v1493
        %v1499 = vadd.f32 %v1455, %v1495
        %s1500 = sld [smem:[#allocation2 + $0x2e]]
        %v1501 = vstv %s1500
        %v1502 = vmul.f32 %v1448, %v1501
        %v1503 = vmul.f32 %v1449, %v1501
        %1506 = vrot.lane.b32.xlu0 %v1502, 127
        %v1507 = vpop.permute.xlu0 %1506
        %1508 = vrot.lane.b32.xlu0 %v1503, 127
        %v1509 = vpop.permute.xlu0 %1508
        %v1512 = vadd.f32 %v1460, %v1507
        %v1513 = vadd.f32 %v1461, %v1509
        %s1514 = sld [smem:[#allocation2 + $0x49]]
        %v1515 = vstv %s1514
        %v1516 = vmul.f32 %v1448, %v1515
        %v1517 = vmul.f32 %v1449, %v1515
        %1520 = vrot.lane.b32.xlu0 %v1516, 127
        %v1521 = vpop.permute.xlu0 %1520
        %1522 = vrot.lane.b32.xlu0 %v1517, 127
        %v1523 = vpop.permute.xlu0 %1522
        %v1526 = vadd.f32 %v1466, %v1521
        %v1527 = vadd.f32 %v1467, %v1523
        %s1528 = sld [smem:[#allocation2 + $0x64]]
        %v1529 = vstv %s1528
        %v1530 = vmul.f32 %v1448, %v1529
        %v1531 = vmul.f32 %v1449, %v1529
        %1534 = vrot.lane.b32.xlu0 %v1530, 127
        %v1535 = vpop.permute.xlu0 %1534
        %1536 = vrot.lane.b32.xlu0 %v1531, 127
        %v1537 = vpop.permute.xlu0 %1536
        %v1540 = vadd.f32 %v1472, %v1535
        %v1541 = vadd.f32 %v1473, %v1537
        %s1542 = sld [smem:[#allocation2 + $0x7f]]
        %v1543 = vstv %s1542
        %v1544 = vmul.f32 %v1448, %v1543
        %v1545 = vmul.f32 %v1449, %v1543
        %1548 = vrot.lane.b32.xlu0 %v1544, 127
        %v1549 = vpop.permute.xlu0 %1548
        %1550 = vrot.lane.b32.xlu0 %v1545, 127
        %v1551 = vpop.permute.xlu0 %1550
        %v1554 = vadd.f32 %v1478, %v1549
        %v1555 = vadd.f32 %v1479, %v1551
        %s1556 = sld [smem:[#allocation2 + $0x9a]]
        %v1557 = vstv %s1556
        %v1558 = vmul.f32 %v1448, %v1557
        %v1559 = vmul.f32 %v1449, %v1557
        %1562 = vrot.lane.b32.xlu0 %v1558, 127
        %v1563 = vpop.permute.xlu0 %1562
        %1564 = vrot.lane.b32.xlu0 %v1559, 127
        %v1565 = vpop.permute.xlu0 %1564
        %v1568 = vadd.f32 %v1484, %v1563
        %v1569 = vadd.f32 %v1485, %v1565
        %s1570 = sld [smem:[#allocation2 + $0x14]]
        %v1571 = vstv %s1570
        %v1572 = vmul.f32 %v1448, %v1571
        %v1573 = vmul.f32 %v1449, %v1571
        %1576 = vrot.lane.b32.xlu0 %v1572, 126
        %v1577 = vpop.permute.xlu0 %1576
        %1578 = vrot.lane.b32.xlu0 %v1573, 126
        %v1579 = vpop.permute.xlu0 %1578
        %v1582 = vadd.f32 %v1498, %v1577
        %v1583 = vadd.f32 %v1499, %v1579
        %s1584 = sld [smem:[#allocation2 + $0x2f]]
        %v1585 = vstv %s1584
        %v1586 = vmul.f32 %v1448, %v1585
        %v1587 = vmul.f32 %v1449, %v1585
        %1590 = vrot.lane.b32.xlu0 %v1586, 126
        %v1591 = vpop.permute.xlu0 %1590
        %1592 = vrot.lane.b32.xlu0 %v1587, 126
        %v1593 = vpop.permute.xlu0 %1592
        %v1596 = vadd.f32 %v1512, %v1591
        %v1597 = vadd.f32 %v1513, %v1593
        %s1598 = sld [smem:[#allocation2 + $0x4a]]
        %v1599 = vstv %s1598
        %v1600 = vmul.f32 %v1448, %v1599
        %v1601 = vmul.f32 %v1449, %v1599
        %1604 = vrot.lane.b32.xlu0 %v1600, 126
        %v1605 = vpop.permute.xlu0 %1604
        %1606 = vrot.lane.b32.xlu0 %v1601, 126
        %v1607 = vpop.permute.xlu0 %1606
        %v1610 = vadd.f32 %v1526, %v1605
        %v1611 = vadd.f32 %v1527, %v1607
        %s1612 = sld [smem:[#allocation2 + $0x65]]
        %v1613 = vstv %s1612
        %v1614 = vmul.f32 %v1448, %v1613
        %v1615 = vmul.f32 %v1449, %v1613
        %1618 = vrot.lane.b32.xlu0 %v1614, 126
        %v1619 = vpop.permute.xlu0 %1618
        %1620 = vrot.lane.b32.xlu0 %v1615, 126
        %v1621 = vpop.permute.xlu0 %1620
        %v1624 = vadd.f32 %v1540, %v1619
        %v1625 = vadd.f32 %v1541, %v1621
        %s1626 = sld [smem:[#allocation2 + $0x80]]
        %v1627 = vstv %s1626
        %v1628 = vmul.f32 %v1448, %v1627
        %v1629 = vmul.f32 %v1449, %v1627
        %1632 = vrot.lane.b32.xlu0 %v1628, 126
        %v1633 = vpop.permute.xlu0 %1632
        %1634 = vrot.lane.b32.xlu0 %v1629, 126
        %v1635 = vpop.permute.xlu0 %1634
        %v1638 = vadd.f32 %v1554, %v1633
        %v1639 = vadd.f32 %v1555, %v1635
        %s1640 = sld [smem:[#allocation2 + $0x9b]]
        %v1641 = vstv %s1640
        %v1642 = vmul.f32 %v1448, %v1641
        %v1643 = vmul.f32 %v1449, %v1641
        %1646 = vrot.lane.b32.xlu0 %v1642, 126
        %v1647 = vpop.permute.xlu0 %1646
        %1648 = vrot.lane.b32.xlu0 %v1643, 126
        %v1649 = vpop.permute.xlu0 %1648
        %v1652 = vadd.f32 %v1568, %v1647
        %v1653 = vadd.f32 %v1569, %v1649
        %v1654 = vld [vmem:[%s1447 + $0x1] sm:$0xff]
        %v1655 = vld [vmem:[%s1447 + $0x9] sm:$0x3f]
        %s1656 = sld [smem:[#allocation2 + $0x15]]
        %v1657 = vstv %s1656
        %v1658 = vmul.f32 %v1654, %v1657
        %v1659 = vmul.f32 %v1655, %v1657
        %v1660 = vadd.f32 %v1582, %v1658
        %v1661 = vadd.f32 %v1583, %v1659
        %s1662 = sld [smem:[#allocation2 + $0x30]]
        %v1663 = vstv %s1662
        %v1664 = vmul.f32 %v1654, %v1663
        %v1665 = vmul.f32 %v1655, %v1663
        %v1666 = vadd.f32 %v1596, %v1664
        %v1667 = vadd.f32 %v1597, %v1665
        %s1668 = sld [smem:[#allocation2 + $0x4b]]
        %v1669 = vstv %s1668
        %v1670 = vmul.f32 %v1654, %v1669
        %v1671 = vmul.f32 %v1655, %v1669
        %v1672 = vadd.f32 %v1610, %v1670
        %v1673 = vadd.f32 %v1611, %v1671
        %s1674 = sld [smem:[#allocation2 + $0x66]]
        %v1675 = vstv %s1674
        %v1676 = vmul.f32 %v1654, %v1675
        %v1677 = vmul.f32 %v1655, %v1675
        %v1678 = vadd.f32 %v1624, %v1676
        %v1679 = vadd.f32 %v1625, %v1677
        %s1680 = sld [smem:[#allocation2 + $0x81]]
        %v1681 = vstv %s1680
        %v1682 = vmul.f32 %v1654, %v1681
        %v1683 = vmul.f32 %v1655, %v1681
        %v1684 = vadd.f32 %v1638, %v1682
        %v1685 = vadd.f32 %v1639, %v1683
        %s1686 = sld [smem:[#allocation2 + $0x9c]]
        %v1687 = vstv %s1686
        %v1688 = vmul.f32 %v1654, %v1687
        %v1689 = vmul.f32 %v1655, %v1687
        %v1690 = vadd.f32 %v1652, %v1688
        %v1691 = vadd.f32 %v1653, %v1689
        %s1692 = sld [smem:[#allocation2 + $0x16]]
        %v1693 = vstv %s1692
        %v1694 = vmul.f32 %v1654, %v1693
        %v1695 = vmul.f32 %v1655, %v1693
        %1698 = vrot.lane.b32.xlu0 %v1694, 127
        %v1699 = vpop.permute.xlu0 %1698
        %1700 = vrot.lane.b32.xlu0 %v1695, 127
        %v1701 = vpop.permute.xlu0 %1700
        %v1704 = vadd.f32 %v1660, %v1699
        %v1705 = vadd.f32 %v1661, %v1701
        %s1706 = sld [smem:[#allocation2 + $0x31]]
        %v1707 = vstv %s1706
        %v1708 = vmul.f32 %v1654, %v1707
        %v1709 = vmul.f32 %v1655, %v1707
        %1712 = vrot.lane.b32.xlu0 %v1708, 127
        %v1713 = vpop.permute.xlu0 %1712
        %1714 = vrot.lane.b32.xlu0 %v1709, 127
        %v1715 = vpop.permute.xlu0 %1714
        %v1718 = vadd.f32 %v1666, %v1713
        %v1719 = vadd.f32 %v1667, %v1715
        %s1720 = sld [smem:[#allocation2 + $0x4c]]
        %v1721 = vstv %s1720
        %v1722 = vmul.f32 %v1654, %v1721
        %v1723 = vmul.f32 %v1655, %v1721
        %1726 = vrot.lane.b32.xlu0 %v1722, 127
        %v1727 = vpop.permute.xlu0 %1726
        %1728 = vrot.lane.b32.xlu0 %v1723, 127
        %v1729 = vpop.permute.xlu0 %1728
        %v1732 = vadd.f32 %v1672, %v1727
        %v1733 = vadd.f32 %v1673, %v1729
        %s1734 = sld [smem:[#allocation2 + $0x67]]
        %v1735 = vstv %s1734
        %v1736 = vmul.f32 %v1654, %v1735
        %v1737 = vmul.f32 %v1655, %v1735
        %1740 = vrot.lane.b32.xlu0 %v1736, 127
        %v1741 = vpop.permute.xlu0 %1740
        %1742 = vrot.lane.b32.xlu0 %v1737, 127
        %v1743 = vpop.permute.xlu0 %1742
        %v1746 = vadd.f32 %v1678, %v1741
        %v1747 = vadd.f32 %v1679, %v1743
        %s1748 = sld [smem:[#allocation2 + $0x82]]
        %v1749 = vstv %s1748
        %v1750 = vmul.f32 %v1654, %v1749
        %v1751 = vmul.f32 %v1655, %v1749
        %1754 = vrot.lane.b32.xlu0 %v1750, 127
        %v1755 = vpop.permute.xlu0 %1754
        %1756 = vrot.lane.b32.xlu0 %v1751, 127
        %v1757 = vpop.permute.xlu0 %1756
        %v1760 = vadd.f32 %v1684, %v1755
        %v1761 = vadd.f32 %v1685, %v1757
        %s1762 = sld [smem:[#allocation2 + $0x9d]]
        %v1763 = vstv %s1762
        %v1764 = vmul.f32 %v1654, %v1763
        %v1765 = vmul.f32 %v1655, %v1763
        %1768 = vrot.lane.b32.xlu0 %v1764, 127
        %v1769 = vpop.permute.xlu0 %1768
        %1770 = vrot.lane.b32.xlu0 %v1765, 127
        %v1771 = vpop.permute.xlu0 %1770
        %v1774 = vadd.f32 %v1690, %v1769
        %v1775 = vadd.f32 %v1691, %v1771
        %s1776 = sld [smem:[#allocation2 + $0x17]]
        %v1777 = vstv %s1776
        %v1778 = vmul.f32 %v1654, %v1777
        %v1779 = vmul.f32 %v1655, %v1777
        %1782 = vrot.lane.b32.xlu0 %v1778, 126
        %v1783 = vpop.permute.xlu0 %1782
        %1784 = vrot.lane.b32.xlu0 %v1779, 126
        %v1785 = vpop.permute.xlu0 %1784
        %v1788 = vadd.f32 %v1704, %v1783
        %v1789 = vadd.f32 %v1705, %v1785
        %s1790 = sld [smem:[#allocation2 + $0x32]]
        %v1791 = vstv %s1790
        %v1792 = vmul.f32 %v1654, %v1791
        %v1793 = vmul.f32 %v1655, %v1791
        %1796 = vrot.lane.b32.xlu0 %v1792, 126
        %v1797 = vpop.permute.xlu0 %1796
        %1798 = vrot.lane.b32.xlu0 %v1793, 126
        %v1799 = vpop.permute.xlu0 %1798
        %v1802 = vadd.f32 %v1718, %v1797
        %v1803 = vadd.f32 %v1719, %v1799
        %s1804 = sld [smem:[#allocation2 + $0x4d]]
        %v1805 = vstv %s1804
        %v1806 = vmul.f32 %v1654, %v1805
        %v1807 = vmul.f32 %v1655, %v1805
        %1810 = vrot.lane.b32.xlu0 %v1806, 126
        %v1811 = vpop.permute.xlu0 %1810
        %1812 = vrot.lane.b32.xlu0 %v1807, 126
        %v1813 = vpop.permute.xlu0 %1812
        %v1816 = vadd.f32 %v1732, %v1811
        %v1817 = vadd.f32 %v1733, %v1813
        %s1818 = sld [smem:[#allocation2 + $0x68]]
        %v1819 = vstv %s1818
        %v1820 = vmul.f32 %v1654, %v1819
        %v1821 = vmul.f32 %v1655, %v1819
        %1824 = vrot.lane.b32.xlu0 %v1820, 126
        %v1825 = vpop.permute.xlu0 %1824
        %1826 = vrot.lane.b32.xlu0 %v1821, 126
        %v1827 = vpop.permute.xlu0 %1826
        %v1830 = vadd.f32 %v1746, %v1825
        %v1831 = vadd.f32 %v1747, %v1827
        %s1832 = sld [smem:[#allocation2 + $0x83]]
        %v1833 = vstv %s1832
        %v1834 = vmul.f32 %v1654, %v1833
        %v1835 = vmul.f32 %v1655, %v1833
        %1838 = vrot.lane.b32.xlu0 %v1834, 126
        %v1839 = vpop.permute.xlu0 %1838
        %1840 = vrot.lane.b32.xlu0 %v1835, 126
        %v1841 = vpop.permute.xlu0 %1840
        %v1844 = vadd.f32 %v1760, %v1839
        %v1845 = vadd.f32 %v1761, %v1841
        %s1846 = sld [smem:[#allocation2 + $0x9e]]
        %v1847 = vstv %s1846
        %v1848 = vmul.f32 %v1654, %v1847
        %v1849 = vmul.f32 %v1655, %v1847
        %1852 = vrot.lane.b32.xlu0 %v1848, 126
        %v1853 = vpop.permute.xlu0 %1852
        %1854 = vrot.lane.b32.xlu0 %v1849, 126
        %v1855 = vpop.permute.xlu0 %1854
        %v1858 = vadd.f32 %v1774, %v1853
        %v1859 = vadd.f32 %v1775, %v1855
        %v1860 = vld [vmem:[%s1447 + $0x2] sm:$0xff]
        %v1861 = vld [vmem:[%s1447 + $0xa] sm:$0x3f]
        %s1862 = sld [smem:[#allocation2 + $0x18]]
        %v1863 = vstv %s1862
        %v1864 = vmul.f32 %v1860, %v1863
        %v1865 = vmul.f32 %v1861, %v1863
        %v1866 = vadd.f32 %v1788, %v1864
        %v1867 = vadd.f32 %v1789, %v1865
        %s1868 = sld [smem:[#allocation2 + $0x33]]
        %v1869 = vstv %s1868
        %v1870 = vmul.f32 %v1860, %v1869
        %v1871 = vmul.f32 %v1861, %v1869
        %v1872 = vadd.f32 %v1802, %v1870
        %v1873 = vadd.f32 %v1803, %v1871
        %s1874 = sld [smem:[#allocation2 + $0x4e]]
        %v1875 = vstv %s1874
        %v1876 = vmul.f32 %v1860, %v1875
        %v1877 = vmul.f32 %v1861, %v1875
        %v1878 = vadd.f32 %v1816, %v1876
        %v1879 = vadd.f32 %v1817, %v1877
        %s1880 = sld [smem:[#allocation2 + $0x69]]
        %v1881 = vstv %s1880
        %v1882 = vmul.f32 %v1860, %v1881
        %v1883 = vmul.f32 %v1861, %v1881
        %v1884 = vadd.f32 %v1830, %v1882
        %v1885 = vadd.f32 %v1831, %v1883
        %s1886 = sld [smem:[#allocation2 + $0x84]]
        %v1887 = vstv %s1886
        %v1888 = vmul.f32 %v1860, %v1887
        %v1889 = vmul.f32 %v1861, %v1887
        %v1890 = vadd.f32 %v1844, %v1888
        %v1891 = vadd.f32 %v1845, %v1889
        %s1892 = sld [smem:[#allocation2 + $0x9f]]
        %v1893 = vstv %s1892
        %v1894 = vmul.f32 %v1860, %v1893
        %v1895 = vmul.f32 %v1861, %v1893
        %v1896 = vadd.f32 %v1858, %v1894
        %v1897 = vadd.f32 %v1859, %v1895
        %s1898 = sld [smem:[#allocation2 + $0x19]]
        %v1899 = vstv %s1898
        %v1900 = vmul.f32 %v1860, %v1899
        %v1901 = vmul.f32 %v1861, %v1899
        %1904 = vrot.lane.b32.xlu0 %v1900, 127
        %v1905 = vpop.permute.xlu0 %1904
        %1906 = vrot.lane.b32.xlu0 %v1901, 127
        %v1907 = vpop.permute.xlu0 %1906
        %v1910 = vadd.f32 %v1866, %v1905
        %v1911 = vadd.f32 %v1867, %v1907
        %s1912 = sld [smem:[#allocation2 + $0x34]]
        %v1913 = vstv %s1912
        %v1914 = vmul.f32 %v1860, %v1913
        %v1915 = vmul.f32 %v1861, %v1913
        %1918 = vrot.lane.b32.xlu0 %v1914, 127
        %v1919 = vpop.permute.xlu0 %1918
        %1920 = vrot.lane.b32.xlu0 %v1915, 127
        %v1921 = vpop.permute.xlu0 %1920
        %v1924 = vadd.f32 %v1872, %v1919
        %v1925 = vadd.f32 %v1873, %v1921
        %s1926 = sld [smem:[#allocation2 + $0x4f]]
        %v1927 = vstv %s1926
        %v1928 = vmul.f32 %v1860, %v1927
        %v1929 = vmul.f32 %v1861, %v1927
        %1932 = vrot.lane.b32.xlu0 %v1928, 127
        %v1933 = vpop.permute.xlu0 %1932
        %1934 = vrot.lane.b32.xlu0 %v1929, 127
        %v1935 = vpop.permute.xlu0 %1934
        %v1938 = vadd.f32 %v1878, %v1933
        %v1939 = vadd.f32 %v1879, %v1935
        %s1940 = sld [smem:[#allocation2 + $0x6a]]
        %v1941 = vstv %s1940
        %v1942 = vmul.f32 %v1860, %v1941
        %v1943 = vmul.f32 %v1861, %v1941
        %1946 = vrot.lane.b32.xlu0 %v1942, 127
        %v1947 = vpop.permute.xlu0 %1946
        %1948 = vrot.lane.b32.xlu0 %v1943, 127
        %v1949 = vpop.permute.xlu0 %1948
        %v1952 = vadd.f32 %v1884, %v1947
        %v1953 = vadd.f32 %v1885, %v1949
        %s1954 = sld [smem:[#allocation2 + $0x85]]
        %v1955 = vstv %s1954
        %v1956 = vmul.f32 %v1860, %v1955
        %v1957 = vmul.f32 %v1861, %v1955
        %1960 = vrot.lane.b32.xlu0 %v1956, 127
        %v1961 = vpop.permute.xlu0 %1960
        %1962 = vrot.lane.b32.xlu0 %v1957, 127
        %v1963 = vpop.permute.xlu0 %1962
        %v1966 = vadd.f32 %v1890, %v1961
        %v1967 = vadd.f32 %v1891, %v1963
        %s1968 = sld [smem:[#allocation2 + $0xa0]]
        %v1969 = vstv %s1968
        %v1970 = vmul.f32 %v1860, %v1969
        %v1971 = vmul.f32 %v1861, %v1969
        %1974 = vrot.lane.b32.xlu0 %v1970, 127
        %v1975 = vpop.permute.xlu0 %1974
        %1976 = vrot.lane.b32.xlu0 %v1971, 127
        %v1977 = vpop.permute.xlu0 %1976
        %v1980 = vadd.f32 %v1896, %v1975
        %v1981 = vadd.f32 %v1897, %v1977
        %s1982 = sld [smem:[#allocation2 + $0x1a]]
        %v1983 = vstv %s1982
        %v1984 = vmul.f32 %v1860, %v1983
        %v1985 = vmul.f32 %v1861, %v1983
        %1988 = vrot.lane.b32.xlu0 %v1984, 126
        %v1989 = vpop.permute.xlu0 %1988
        %1990 = vrot.lane.b32.xlu0 %v1985, 126
        %v1991 = vpop.permute.xlu0 %1990
        %v1994 = vadd.f32 %v1910, %v1989
        %v1995 = vadd.f32 %v1911, %v1991
        %s1996 = sld [smem:[#allocation2 + $0x35]]
        %v1997 = vstv %s1996
        %v1998 = vmul.f32 %v1860, %v1997
        %v1999 = vmul.f32 %v1861, %v1997
        %2002 = vrot.lane.b32.xlu0 %v1998, 126
        %v2003 = vpop.permute.xlu0 %2002
        %2004 = vrot.lane.b32.xlu0 %v1999, 126
        %v2005 = vpop.permute.xlu0 %2004
        %v2008 = vadd.f32 %v1924, %v2003
        %v2009 = vadd.f32 %v1925, %v2005
        %s2010 = sld [smem:[#allocation2 + $0x50]]
        %v2011 = vstv %s2010
        %v2012 = vmul.f32 %v1860, %v2011
        %v2013 = vmul.f32 %v1861, %v2011
        %2016 = vrot.lane.b32.xlu0 %v2012, 126
        %v2017 = vpop.permute.xlu0 %2016
        %2018 = vrot.lane.b32.xlu0 %v2013, 126
        %v2019 = vpop.permute.xlu0 %2018
        %v2022 = vadd.f32 %v1938, %v2017
        %v2023 = vadd.f32 %v1939, %v2019
        %s2024 = sld [smem:[#allocation2 + $0x6b]]
        %v2025 = vstv %s2024
        %v2026 = vmul.f32 %v1860, %v2025
        %v2027 = vmul.f32 %v1861, %v2025
        %2030 = vrot.lane.b32.xlu0 %v2026, 126
        %v2031 = vpop.permute.xlu0 %2030
        %2032 = vrot.lane.b32.xlu0 %v2027, 126
        %v2033 = vpop.permute.xlu0 %2032
        %v2036 = vadd.f32 %v1952, %v2031
        %v2037 = vadd.f32 %v1953, %v2033
        %s2038 = sld [smem:[#allocation2 + $0x86]]
        %v2039 = vstv %s2038
        %v2040 = vmul.f32 %v1860, %v2039
        %v2041 = vmul.f32 %v1861, %v2039
        %2044 = vrot.lane.b32.xlu0 %v2040, 126
        %v2045 = vpop.permute.xlu0 %2044
        %2046 = vrot.lane.b32.xlu0 %v2041, 126
        %v2047 = vpop.permute.xlu0 %2046
        %v2050 = vadd.f32 %v1966, %v2045
        %v2051 = vadd.f32 %v1967, %v2047
        %s2052 = sld [smem:[#allocation2 + $0xa1]]
        %v2053 = vstv %s2052
        %v2054 = vmul.f32 %v1860, %v2053
        %v2055 = vmul.f32 %v1861, %v2053
        %2058 = vrot.lane.b32.xlu0 %v2054, 126
        %v2059 = vpop.permute.xlu0 %2058
        %2060 = vrot.lane.b32.xlu0 %v2055, 126
        %v2061 = vpop.permute.xlu0 %2060
        %v2064 = vadd.f32 %v1980, %v2059
        %v2065 = vadd.f32 %v1981, %v2061
        %vm2066 = vcmask 113664
        %2067 = vst.msk [vmem:[%s197] sm:$0xff] %vm2066, %v1994
        %vm2068 = vcmask 111616
        %2069 = vst.msk [vmem:[%s197 + $0x8] sm:$0x3f] %vm2068, %v1995
        %s2070 = scalar_lea.vmem %s197, 16
        %2071 = vst.msk [vmem:[%s2070] sm:$0xff] %vm2066, %v2008
        %2072 = vst.msk [vmem:[%s2070 + $0x8] sm:$0x3f] %vm2068, %v2009
        %s2073 = scalar_lea.vmem %s197, 32
        %2074 = vst.msk [vmem:[%s2073] sm:$0xff] %vm2066, %v2022
        %2075 = vst.msk [vmem:[%s2073 + $0x8] sm:$0x3f] %vm2068, %v2023
        %s2076 = scalar_lea.vmem %s197, 48
        %2077 = vst.msk [vmem:[%s2076] sm:$0xff] %vm2066, %v2036
        %2078 = vst.msk [vmem:[%s2076 + $0x8] sm:$0x3f] %vm2068, %v2037
        %s2079 = scalar_lea.vmem %s197, 64
        %2080 = vst.msk [vmem:[%s2079] sm:$0xff] %vm2066, %v2050
        %2081 = vst.msk [vmem:[%s2079 + $0x8] sm:$0x3f] %vm2068, %v2051
        %s2082 = scalar_lea.vmem %s197, 80
        %2083 = vst.msk [vmem:[%s2082] sm:$0xff] %vm2066, %v2064
        %2084 = vst.msk [vmem:[%s2082 + $0x8] sm:$0x3f] %vm2068, %v2065
        %p2085 = scmp.lt.s32.totalorder %s16, 1
        %s2086 = scalar_select %p2085, %s16, 1
        %s2087 = smul.addr %s2086, 12
        %s2088 = smul.addr %s2087, 8
        %s2089 = scalar_lea.vmem %s3, %s2088
        // Predicated region
        $region41: #{conv2d_pallas.1} parent=31 // pred_check
          %p2090 = pneg %p102
        $region42: #{conv2d_pallas.1} parent=31 // pred_check_branch
          %2092 = sbr.rel (%p2090) target = $region44
        $region43: #{conv2d_pallas.1} parent=31 // pred_region
          _
        $region44: #{conv2d_pallas.1} parent=31 // pred_fallthru
          _
      $region32: #{conv2d_pallas.1} parent=5 // pred_fallthru
        _
      %p2093 = scmp.le.s32.totalorder 2, %s11
      // Predicated region
      $region45: #{conv2d_pallas.1} parent=5 // pred_check
        %p2094 = pneg %p2093
      $region46: #{conv2d_pallas.1} parent=5 // pred_check_branch
        %2096 = sbr.rel (%p2094) target = $region48
      $region47: #{conv2d_pallas.1} parent=5 // pred_region
        %s2097 = ssub.s32 %s11, 2
        // Predicated region
        $region49: #{conv2d_pallas.1} parent=47 // pred_check
          %p2098 = pneg %p108
        $region50: #{conv2d_pallas.1} parent=47 // pred_check_branch
          %2100 = sbr.rel (%p2098) target = $region52
        $region51: #{conv2d_pallas.1} parent=47 // pred_region
          %p2101 = scmp.lt.s32.totalorder %s17, 1
          %s2102 = scalar_select %p2101, %s17, 1
          %s2103 = smul.addr %s2102, 12
          %s2104 = smul.addr %s2103, 8
          %s2105 = scalar_lea.vmem %s3, %s2104
        $region52: #{conv2d_pallas.1} parent=47 // pred_fallthru
          _
      $region48: #{conv2d_pallas.1} parent=5 // pred_fallthru
        _
    $region6: #{conv2d_pallas.1} parent=1 // loop_footer
      %s15 = sadd.s32 1, %s11
    $region7: #{conv2d_pallas.1} parent=1 // loop_footer_branch
      %10 = sbr.rel target = $region3
    $region8: #{conv2d_pallas.1} parent=1 // loop_exit
      _
    %2106 = vsyncpa [#allocation3], 1
    %s2107 = scalar_lea.sflag [#allocation3], 1
    %2108 = vsyncpa %s2107, 1
    %2109 = vsyncpa [#allocation5], 1

</llo_original>
